<compile_context>
chip_gen: v6e
topology: v6e:2x2x1
jax: 0.10.0
libtpu: 0.0.40
codegen_flags: <defaults>
</compile_context>

<pallas_src>
import jax
import jax.numpy as jnp
from jax.experimental import pallas as pl
from jax.experimental.pallas import tpu as pltpu

IN_FEATURES = 200
OUT_FEATURES = 11
MIN_TILE = 256   # smallest batch tile worth pipelining


def _linear_relu_kernel(x_ref, w_ref, b_ref, o_ref):
    """One batch tile: o = relu(x @ w + b).

    x_ref: [TB, 200] native dtype (per-step block, double/triple-buffered)
    w_ref: [200, 11] same dtype as x (constant index_map -> resident in VMEM)
    b_ref: [1, 11]   f32            (constant index_map -> resident in VMEM)
    o_ref: [TB, 11]  f32
    """
    acc = jnp.dot(x_ref[...], w_ref[...], preferred_element_type=jnp.float32)
    o_ref[...] = jnp.maximum(acc + b_ref[...], 0.0).astype(o_ref.dtype)


def _device_config():
    """Per-generation (batch_tile, vmem_limit_bytes, core_parallel, x_buffers)."""
    try:
        kind = jax.devices()[0].device_kind.lower()
    except Exception:
        kind = ""
    if "v7" in kind or "7x" in kind:
        # ~3.2 TB/s HBM, 64 MiB VMEM (32 MiB scoped default), 2 TensorCores.
        # 8192-row f32 x tile: 6.55 MiB/buffer * 3 + 2 * lane-padded out ~ 28 MiB.
        return 8192, 48 * 1024 * 1024, True, 3
    if "v6" in kind:
        # ~1.4 TB/s HBM, 128 MiB VMEM. 4096-row tile ~ 17 MiB double-buffered.
        return 4096, 64 * 1024 * 1024, False, 2
    if "v5" in kind:
        # ~0.8 TB/s HBM, 16 MiB scoped VMEM default -> 2048-row tile (~6 MiB).
        return 2048, None, False, 2
    # Unknown / older generation: conservative default.
    return 2048, None, False, 2


@jax.jit
def teacher_end_model_forward(x, w_t, b):
    """y = relu(x @ w_t + b).  x: [B, 200], w_t: [200, 11] (= W^T), b: [11] or [1, 11]."""
    B = x.shape[0]
    b_f32 = jnp.asarray(b, jnp.float32).reshape(1, OUT_FEATURES)
    # Weight matched to x's native dtype (tiny array, negligible); x itself is
    # never re-cast or re-materialized in the wrapper.
    w = w_t.astype(x.dtype)

    batch_tile, vmem_limit, core_parallel, x_buffers = _device_config()

    # Shrink the tile so the grid has >= 2 steps (prefetch/compute overlap).
    tb = batch_tile
    while tb > MIN_TILE and B < 2 * tb:
        tb //= 2
    if B < 2 * tb:
        # Single-step grid gets zero overlap and pays full launch cost for a
        # ~us workload; plain XLA fusion wins in that regime.
        y = jnp.dot(x, w, preferred_element_type=jnp.float32) + b_f32
        return jnp.maximum(y, 0.0)

    # Partial last block is handled by Pallas masking (rows are independent,
    # out-of-bounds writes are discarded) -> no jnp.pad pass over x.
    grid = (pl.cdiv(B, tb),)

    x_bytes = jnp.dtype(x.dtype).itemsize
    w_bytes = jnp.dtype(w.dtype).itemsize
    cost = pl.CostEstimate(
        flops=2 * B * IN_FEATURES * OUT_FEATURES,
        transcendentals=0,
        bytes_accessed=(B * IN_FEATURES * x_bytes          # x, native dtype
                        + IN_FEATURES * OUT_FEATURES * w_bytes  # W^T (resident)
                        + OUT_FEATURES * 4                  # bias
                        + B * OUT_FEATURES * 4),            # output (f32)
    )

    x_spec_kwargs = {}
    if x_buffers != 2:
        # Deeper x pipelining (v7x): hides DMA issue latency behind the short
        # per-step compute.
        x_spec_kwargs["pipeline_mode"] = pl.Buffered(x_buffers)
    in_specs = [
        pl.BlockSpec((tb, IN_FEATURES), lambda i: (i, 0), **x_spec_kwargs),   # x tile
        pl.BlockSpec((IN_FEATURES, OUT_FEATURES), lambda i: (0, 0)),          # W^T
        pl.BlockSpec((1, OUT_FEATURES), lambda i: (0, 0)),                    # bias
    ]

    # Plain "parallel" vs "arbitrary" is measured-neutral; only CORE_PARALLEL
    # changes codegen, and only v7x has two TensorCores to shard across.
    dim_sem = (pltpu.CORE_PARALLEL,) if core_parallel else ("parallel",)
    cp_kwargs = dict(dimension_semantics=dim_sem)
    if vmem_limit is not None:
        cp_kwargs["vmem_limit_bytes"] = vmem_limit

    return pl.pallas_call(
        _linear_relu_kernel,
        out_shape=jax.ShapeDtypeStruct((B, OUT_FEATURES), jnp.float32),
        grid=grid,
        in_specs=in_specs,
        out_specs=pl.BlockSpec((tb, OUT_FEATURES), lambda i: (i, 0)),
        compiler_params=pltpu.CompilerParams(**cp_kwargs),
        cost_estimate=cost,
    )(x, w, b_f32)


def concat_new_model_forward(x1, x2, w_t, b):
    """ConcatNewModel.forward(x1, x2) = end(front(x1), x2).

    TODO(synk): `front` has no defined structure in the spec; treated as identity.
    The end model assembles the [B, 200] feature matrix (feature concat) and
    applies Linear(200, 11) + ReLU via the Pallas kernel.
    """
    x = jnp.concatenate([x1, x2], axis=-1)
    assert x.shape[-1] == IN_FEATURES
    return teacher_end_model_forward(x, w_t, b)


def init_params(key):
    """nn.Linear default init: U(-1/sqrt(fan_in), 1/sqrt(fan_in))."""
    k_w, k_b = jax.random.split(key)
    bound = 1.0 / jnp.sqrt(float(IN_FEATURES))
    # PyTorch weight is [out, in]; store transposed as [in, out] for the kernel.
    w_t = jax.random.uniform(
        k_w, (IN_FEATURES, OUT_FEATURES), jnp.float32, -bound, bound)
    b = jax.random.uniform(k_b, (1, OUT_FEATURES), jnp.float32, -bound, bound)
    return w_t, b


if __name__ == "__main__":
    key = jax.random.PRNGKey(0)
    k1, k2, kp = jax.random.split(key, 3)

    # Small batch, deliberately NOT a multiple of the tile so the no-pad /
    # partial-last-block path is exercised. Feature split 128 + 72 = 200.
    B = 1037
    x1 = jax.random.normal(k1, (B, 128), jnp.float32)
    x2 = jax.random.normal(k2, (B, IN_FEATURES - 128), jnp.float32)
    w_t, b = init_params(kp)

    out = concat_new_model_forward(x1, x2, w_t, b)
    out = jax.block_until_ready(out)
    assert out.shape == (B, OUT_FEATURES)
    assert out.dtype == jnp.float32

    # Full-f32 reference (same semantics as the PyTorch module's forward).
    x_cat = jnp.concatenate([x1, x2], axis=-1)
    ref = jnp.maximum(
        jnp.dot(x_cat, w_t, precision=jax.lax.Precision.HIGHEST) + b, 0.0)
    assert jnp.allclose(out, ref, atol=2e-2, rtol=2e-2), "mismatch vs f32 reference"

    print("KERNEL_OK")
</pallas_src>

<mosaic_0001>
module attributes {stable_mosaic.version = 11 : i64} {
  func.func @_linear_relu_kernel(%arg0: i32, %arg1: memref<512x200xf32, #tpu.memory_space<vmem>>, %arg2: memref<200x11xf32, #tpu.memory_space<vmem>>, %arg3: memref<1x11xf32, #tpu.memory_space<vmem>>, %arg4: memref<512x11xf32, #tpu.memory_space<vmem>>) attributes {dimension_semantics = [#tpu.dimension_semantics<parallel>], iteration_bounds = array<i64: 3>, scalar_prefetch = 0 : i64, scratch_operands = 0 : i64, tpu.core_type = #tpu.core_type<tc>, window_params = [{transform_indices = @transform_0, window_bounds = array<i64: 512, 200>}, {pipeline_mode = #tpu.pipeline_mode<synchronous>, transform_indices = @transform_1, window_bounds = array<i64: 200, 11>}, {pipeline_mode = #tpu.pipeline_mode<synchronous>, transform_indices = @transform_2, window_bounds = array<i64: 1, 11>}, {transform_indices = @transform_3, window_bounds = array<i64: 512, 11>}]} {
    %c0 = arith.constant 0 : index
    %c0_0 = arith.constant 0 : index
    %0 = vector.load %arg1[%c0, %c0_0] : memref<512x200xf32, #tpu.memory_space<vmem>>, vector<512x200xf32>
    %c0_1 = arith.constant 0 : index
    %c0_2 = arith.constant 0 : index
    %1 = vector.load %arg2[%c0_1, %c0_2] : memref<200x11xf32, #tpu.memory_space<vmem>>, vector<200x11xf32>
    %cst = arith.constant dense<0.000000e+00> : vector<512x11xf32>
    %2 = tpu.matmul %0, %1, %cst {dimension_numbers = #tpu.dot_dimension_numbers<[1], [0], [0], [1], [0, 0, 1, 1], [], []>} : vector<512x200xf32>, vector<200x11xf32>, vector<512x11xf32> -> vector<512x11xf32>
    %c0_3 = arith.constant 0 : index
    %c0_4 = arith.constant 0 : index
    %3 = vector.load %arg3[%c0_3, %c0_4] : memref<1x11xf32, #tpu.memory_space<vmem>>, vector<1x11xf32>
    %4 = vector.broadcast %3 : vector<1x11xf32> to vector<512x11xf32>
    %5 = arith.addf %2, %4 : vector<512x11xf32>
    %cst_5 = arith.constant 0.000000e+00 : f32
    %6 = vector.broadcast %cst_5 : f32 to vector<512x11xf32>
    %7 = arith.maximumf %5, %6 : vector<512x11xf32>
    %c0_6 = arith.constant 0 : index
    %c0_7 = arith.constant 0 : index
    %8 = vector.load %arg4[%c0_6, %c0_7] : memref<512x11xf32, #tpu.memory_space<vmem>>, vector<512x11xf32>
    tpu.vector_store %arg4[%c0_6, %c0_7], %7 {strides = array<i32>} : memref<512x11xf32, #tpu.memory_space<vmem>>, vector<512x11xf32>,
    return
  }
  func.func @transform_0(%arg0: i32) -> (i32, i32) {
    %c0_i32 = arith.constant 0 : i32
    %c0_i32_0 = arith.constant 0 : i32
    return %arg0, %c0_i32 : i32, i32
  }
  func.func @transform_1(%arg0: i32) -> (i32, i32) {
    %c0_i32 = arith.constant 0 : i32
    %c0_i32_0 = arith.constant 0 : i32
    %c0_i32_1 = arith.constant 0 : i32
    return %c0_i32, %c0_i32_0 : i32, i32
  }
  func.func @transform_2(%arg0: i32) -> (i32, i32) {
    %c0_i32 = arith.constant 0 : i32
    %c0_i32_0 = arith.constant 0 : i32
    %c0_i32_1 = arith.constant 0 : i32
    return %c0_i32, %c0_i32_0 : i32, i32
  }
  func.func @transform_3(%arg0: i32) -> (i32, i32) {
    %c0_i32 = arith.constant 0 : i32
    %c0_i32_0 = arith.constant 0 : i32
    return %arg0, %c0_i32 : i32, i32
  }
}

</mosaic_0001>

<llo_original>
// kernel: teacher_end_model_forward.1
$region0: #{teacher_end_model_forward.1}
  #allocation0 [shape = 'u32[]', space=smem, size = 0x4, offset = 0x4, fixed_abs, tag = 'smem constant byte address 0x4 - core index']
  #allocation1 [shape = 'u32[144,128]{1,0:T(1,128)}', space=vmem, size = 0x12000, scoped, tag = 'internal scratch']
  %s0 = inlined_call_operand.vmem [shape: f32[1037,200], index: 0, kind: input, shape index: {}]
  %s1 = inlined_call_operand.vmem [shape: f32[200,11], index: 1, kind: input, shape index: {}]
  %s2 = inlined_call_operand.vmem [shape: f32[1,11], index: 2, kind: input, shape index: {}]
  %s3 = inlined_call_operand.vmem [shape: f32[1037,11], index: 3, kind: output, shape index: {}]
  %s4 = sld [smem:[#allocation0]]
  $region93: #{teacher_end_model_forward.1} parent=0
    _
  %s6 = ssub.s32 1, %s4
  %s7 = scalar_select 0, %s6, %s4
  $region1: #{teacher_end_model_forward.1} parent=0
    #allocation2 [shape = 'u8[524288]{0}', space=vmem, size = 0x80000, scoped, tag = 'output window, operand 0']
    loop: start=0, step=1, limit=5
    $region2: #{teacher_end_model_forward.1} parent=1 // loop_pre_header
      _
    $region3: #{teacher_end_model_forward.1} parent=1 // loop_header
      %s9 = sphi 0, %s13
      %p10 = scmp.ge.s32.totalorder %s9, 5
      %s19 = sphi 0, %s21
      %s22 = sphi 0, %s19
      %s23 = sphi 0, %s22
      %s39 = sphi 0, %s23
      %s43 = sphi 0, %s43
      %s45 = sphi 0, %s43
      %s46 = sphi 0, %s45
      %s60 = sphi 0, %s46
      %s64 = sphi 0, %s64
      %s66 = sphi 0, %s64
      %s67 = sphi 0, %s66
      %s81 = sphi 0, %s67
      %s87 = sphi 0, %s89
      %s90 = sphi 0, %s87
      %s91 = sphi 0, %s90
      %s107 = sphi 0, %s91
    $region4: #{teacher_end_model_forward.1} parent=1 // loop_header_branch
      %12 = sbr.rel (%p10) target = $region8
    $region5: #{teacher_end_model_forward.1} parent=1 // loop_body
      %s14 = ssub.s32 %s9, 1
      %s15 = ssub.s32 %s9, 2
      %s16 = sadd.s32 %s9, 1
      %s17 = ssub.s32 %s9, %s16
      %p18 = scmp.eq.s32.totalorder %s17, 0
      %s20 = sadd.s32 %s19, 1
      %s21 = scalar_select %p18, %s19, %s20
      %p24 = pneg %p18
      %p25 = scmp.eq.s32.totalorder %s9, 2
      %p26 = por %p24, %p25
      %p27 = scmp.ne.s32.totalorder %s19, %s22
      %p28 = scmp.eq.s32.totalorder %s9, 0
      %p29 = por %p27, %p28
      %p30 = scmp.ne.s32.totalorder %s19, %s22
      %p31 = scmp.eq.s32.totalorder %s14, 2
      %p32 = por %p30, %p31
      %p33 = scmp.ne.s32.totalorder %s22, %s23
      %p34 = scmp.eq.s32.totalorder %s14, 0
      %p35 = por %p33, %p34
      %p36 = scmp.ne.s32.totalorder %s22, %s23
      %p37 = scmp.eq.s32.totalorder %s15, 2
      %p38 = por %p36, %p37
      %p40 = scmp.ne.s32.totalorder %s23, %s39
      %p41 = scmp.eq.s32.totalorder %s15, 0
      %p42 = por %p40, %p41
      %s44 = sadd.s32 %s43, 1
      %p47 = scmp.eq.s32.totalorder %s9, 2
      %p48 = scmp.ne.s32.totalorder %s43, %s45
      %p49 = scmp.eq.s32.totalorder %s9, 0
      %p50 = por %p48, %p49
      %p51 = scmp.ne.s32.totalorder %s43, %s45
      %p52 = scmp.eq.s32.totalorder %s14, 2
      %p53 = por %p51, %p52
      %p54 = scmp.ne.s32.totalorder %s45, %s46
      %p55 = scmp.eq.s32.totalorder %s14, 0
      %p56 = por %p54, %p55
      %p57 = scmp.ne.s32.totalorder %s45, %s46
      %p58 = scmp.eq.s32.totalorder %s15, 2
      %p59 = por %p57, %p58
      %p61 = scmp.ne.s32.totalorder %s46, %s60
      %p62 = scmp.eq.s32.totalorder %s15, 0
      %p63 = por %p61, %p62
      %s65 = sadd.s32 %s64, 1
      %p68 = scmp.eq.s32.totalorder %s9, 2
      %p69 = scmp.ne.s32.totalorder %s64, %s66
      %p70 = scmp.eq.s32.totalorder %s9, 0
      %p71 = por %p69, %p70
      %p72 = scmp.ne.s32.totalorder %s64, %s66
      %p73 = scmp.eq.s32.totalorder %s14, 2
      %p74 = por %p72, %p73
      %p75 = scmp.ne.s32.totalorder %s66, %s67
      %p76 = scmp.eq.s32.totalorder %s14, 0
      %p77 = por %p75, %p76
      %p78 = scmp.ne.s32.totalorder %s66, %s67
      %p79 = scmp.eq.s32.totalorder %s15, 2
      %p80 = por %p78, %p79
      %p82 = scmp.ne.s32.totalorder %s67, %s81
      %p83 = scmp.eq.s32.totalorder %s15, 0
      %p84 = por %p82, %p83
      %s85 = ssub.s32 %s9, %s16
      %p86 = scmp.eq.s32.totalorder %s85, 0
      %s88 = sadd.s32 %s87, 1
      %s89 = scalar_select %p86, %s87, %s88
      %p92 = pneg %p86
      %p93 = scmp.eq.s32.totalorder %s9, 2
      %p94 = por %p92, %p93
      %p95 = scmp.ne.s32.totalorder %s87, %s90
      %p96 = scmp.eq.s32.totalorder %s9, 0
      %p97 = por %p95, %p96
      %p98 = scmp.ne.s32.totalorder %s87, %s90
      %p99 = scmp.eq.s32.totalorder %s14, 2
      %p100 = por %p98, %p99
      %p101 = scmp.ne.s32.totalorder %s90, %s91
      %p102 = scmp.eq.s32.totalorder %s14, 0
      %p103 = por %p101, %p102
      %p104 = scmp.ne.s32.totalorder %s90, %s91
      %p105 = scmp.eq.s32.totalorder %s15, 2
      %p106 = por %p104, %p105
      %p108 = scmp.ne.s32.totalorder %s91, %s107
      %p109 = scmp.eq.s32.totalorder %s15, 0
      %p110 = por %p108, %p109
      %p111 = scmp.le.s32.totalorder 1, %s9
      %p112 = scmp.lt.s32.totalorder %s9, 4
      %p113 = pnand %p111, %p112
      %p114 = pneg %p113
      // Predicated region
      $region9: #{teacher_end_model_forward.1} parent=5 // pred_check
        _
      $region10: #{teacher_end_model_forward.1} parent=5 // pred_check_branch
        %116 = sbr.rel (%p113) target = $region12
      $region11: #{teacher_end_model_forward.1} parent=5 // pred_region
        %s117 = ssub.s32 %s9, 1
        // Predicated region
        $region13: #{teacher_end_model_forward.1} parent=11 // pred_check
          %p118 = pneg %p56
        $region14: #{teacher_end_model_forward.1} parent=11 // pred_check_branch
          %120 = sbr.rel (%p118) target = $region16
        $region15: #{teacher_end_model_forward.1} parent=11 // pred_region
          _
        $region16: #{teacher_end_model_forward.1} parent=11 // pred_fallthru
          _
        // Predicated region
        $region17: #{teacher_end_model_forward.1} parent=11 // pred_check
          %p121 = pneg %p77
        $region18: #{teacher_end_model_forward.1} parent=11 // pred_check_branch
          %123 = sbr.rel (%p121) target = $region20
        $region19: #{teacher_end_model_forward.1} parent=11 // pred_region
          _
        $region20: #{teacher_end_model_forward.1} parent=11 // pred_fallthru
          _
      $region12: #{teacher_end_model_forward.1} parent=5 // pred_fallthru
        _
      %p124 = scmp.lt.s32.totalorder %s9, 3
      // Predicated region
      $region21: #{teacher_end_model_forward.1} parent=5 // pred_check
        %p125 = pneg %p124
      $region22: #{teacher_end_model_forward.1} parent=5 // pred_check_branch
        %127 = sbr.rel (%p125) target = $region24
      $region23: #{teacher_end_model_forward.1} parent=5 // pred_region
        // Predicated region
        $region25: #{teacher_end_model_forward.1} parent=23 // pred_check
          %p128 = pneg %p29
        $region26: #{teacher_end_model_forward.1} parent=23 // pred_check_branch
          %130 = sbr.rel (%p128) target = $region28
        $region27: #{teacher_end_model_forward.1} parent=23 // pred_region
          %s131 = smul.u32 64, %s9
          %s132 = ssub.s32 130, %s131
          %p133 = scmp.lt.s32.totalorder %s132, 64
          %s134 = scalar_select %p133, %s132, 64
          %s135 = smul.u32 128, %s134
          %s136 = smul.u32 %s135, 2
          %p137 = scmp.lt.s32.totalorder %s131, 129
          %s138 = scalar_select %p137, %s131, 129
          %s139 = smul.addr %s138, 2
          %s140 = smul.addr %s139, 8
          %s141 = scalar_lea.vmem %s0, %s140
          %s142 = smul.u32 64, %s9
          %s143 = ssub.s32 130, %s142
          %p144 = scmp.lt.s32.totalorder %s143, 64
          %s145 = scalar_select %p144, %s143, 64
          %s146 = smul.u32 128, %s145
          %s147 = smul.u32 %s146, 2
        $region28: #{teacher_end_model_forward.1} parent=23 // pred_fallthru
          _
      $region24: #{teacher_end_model_forward.1} parent=5 // pred_fallthru
        _
      %p148 = scmp.le.s32.totalorder 1, %s9
      %p149 = scmp.lt.s32.totalorder %s9, 4
      %p150 = pnand %p148, %p149
      %p151 = pneg %p150
      // Predicated region
      $region29: #{teacher_end_model_forward.1} parent=5 // pred_check
        _
      $region30: #{teacher_end_model_forward.1} parent=5 // pred_check_branch
        %153 = sbr.rel (%p150) target = $region32
      $region31: #{teacher_end_model_forward.1} parent=5 // pred_region
        %s154 = ssub.s32 %s9, 1
        %s155 = smul.u32 64, %s14
        %s156 = ssub.s32 130, %s155
        %p157 = scmp.lt.s32.totalorder %s156, 64
        %s158 = scalar_select %p157, %s156, 64
        %s159 = smul.u32 128, %s158
        %s160 = smul.u32 %s159, 2
        %p161 = scmp.lt.s32.totalorder %s155, 129
        %s162 = scalar_select %p161, %s155, 129
        %s163 = smul.addr %s162, 2
        %s164 = smul.addr %s163, 8
        %s165 = scalar_lea.vmem %s0, %s164
        %p166 = pneg %p35
        %p167 = pneg %p32
        %p168 = pneg %p56
        %p169 = pneg %p53
        %p170 = pneg %p77
        %p171 = pneg %p74
        %p172 = pneg %p103
        %p173 = pneg %p100
        %s174 = sand.u32 %s90, 1
        %s175 = sand.u32 %s90, 1
        %s176 = smul.addr %s175, 512
        %s177 = scalar_lea.vmem [#allocation2], %s176
        %s178 = smul.u32 64, %s14
        %s179 = ssub.s32 130, %s178
        %p180 = scmp.lt.s32.totalorder %s179, 64
        %s181 = scalar_select %p180, %s179, 64
        %s182 = smul.u32 128, %s181
        %s183 = smul.u32 %s182, 2
        %p184 = scmp.lt.s32.totalorder %s178, 129
        %s185 = scalar_select %p184, %s178, 129
        %s186 = smul.addr %s185, 2
        %s187 = smul.addr %s186, 8
        %s188 = scalar_lea.vmem %s0, %s187
        %s189 = smul.u32 64, %s14
        %s190 = ssub.s32 130, %s189
        %p191 = scmp.lt.s32.totalorder %s190, 64
        %s192 = scalar_select %p191, %s190, 64
        %s193 = smul.u32 128, %s192
        %s194 = smul.u32 %s193, 2
        %s195 = smul.u32 64, %s14
        %s196 = ssub.s32 130, %s195
        %p197 = scmp.lt.s32.totalorder %s196, 64
        %s198 = scalar_select %p197, %s196, 64
        %s199 = smul.u32 128, %s198
        %v200 = vld [vmem:[%s188] sm:$0xff]
        %v201 = vld [vmem:[%s188 + $0x8] sm:$0xff]
        %v202 = vld [vmem:[%s188 + $0x10] sm:$0xff]
        %v203 = vld [vmem:[%s188 + $0x18] sm:$0xff]
        %v204 = vld [vmem:[%s188 + $0x20] sm:$0xff]
        %v205 = vld [vmem:[%s188 + $0x28] sm:$0xff]
        %v206 = vld [vmem:[%s188 + $0x30] sm:$0xff]
        %v207 = vld [vmem:[%s188 + $0x38] sm:$0xff]
        %v208 = vld [vmem:[%s188 + $0x40] sm:$0xff]
        %v209 = vld [vmem:[%s188 + $0x48] sm:$0xff]
        %v210 = vld [vmem:[%s188 + $0x50] sm:$0xff]
        %v211 = vld [vmem:[%s188 + $0x58] sm:$0xff]
        %v212 = vld [vmem:[%s188 + $0x60] sm:$0xff]
        %v213 = vld [vmem:[%s188 + $0x68] sm:$0xff]
        %v214 = vld [vmem:[%s188 + $0x70] sm:$0xff]
        %v215 = vld [vmem:[%s188 + $0x78] sm:$0xff]
        %v216 = vld [vmem:[%s188 + $0x80] sm:$0xff]
        %v217 = vld [vmem:[%s188 + $0x88] sm:$0xff]
        %v218 = vld [vmem:[%s188 + $0x90] sm:$0xff]
        %v219 = vld [vmem:[%s188 + $0x98] sm:$0xff]
        %v220 = vld [vmem:[%s188 + $0xa0] sm:$0xff]
        %v221 = vld [vmem:[%s188 + $0xa8] sm:$0xff]
        %v222 = vld [vmem:[%s188 + $0xb0] sm:$0xff]
        %v223 = vld [vmem:[%s188 + $0xb8] sm:$0xff]
        %v224 = vld [vmem:[%s188 + $0xc0] sm:$0xff]
        %v225 = vld [vmem:[%s188 + $0xc8] sm:$0xff]
        %v226 = vld [vmem:[%s188 + $0xd0] sm:$0xff]
        %v227 = vld [vmem:[%s188 + $0xd8] sm:$0xff]
        %v228 = vld [vmem:[%s188 + $0xe0] sm:$0xff]
        %v229 = vld [vmem:[%s188 + $0xe8] sm:$0xff]
        %v230 = vld [vmem:[%s188 + $0xf0] sm:$0xff]
        %v231 = vld [vmem:[%s188 + $0xf8] sm:$0xff]
        %v232 = vld [vmem:[%s188 + $0x100] sm:$0xff]
        %v233 = vld [vmem:[%s188 + $0x108] sm:$0xff]
        %v234 = vld [vmem:[%s188 + $0x110] sm:$0xff]
        %v235 = vld [vmem:[%s188 + $0x118] sm:$0xff]
        %v236 = vld [vmem:[%s188 + $0x120] sm:$0xff]
        %v237 = vld [vmem:[%s188 + $0x128] sm:$0xff]
        %v238 = vld [vmem:[%s188 + $0x130] sm:$0xff]
        %v239 = vld [vmem:[%s188 + $0x138] sm:$0xff]
        %v240 = vld [vmem:[%s188 + $0x140] sm:$0xff]
        %v241 = vld [vmem:[%s188 + $0x148] sm:$0xff]
        %v242 = vld [vmem:[%s188 + $0x150] sm:$0xff]
        %v243 = vld [vmem:[%s188 + $0x158] sm:$0xff]
        %v244 = vld [vmem:[%s188 + $0x160] sm:$0xff]
        %v245 = vld [vmem:[%s188 + $0x168] sm:$0xff]
        %v246 = vld [vmem:[%s188 + $0x170] sm:$0xff]
        %v247 = vld [vmem:[%s188 + $0x178] sm:$0xff]
        %v248 = vld [vmem:[%s188 + $0x180] sm:$0xff]
        %v249 = vld [vmem:[%s188 + $0x188] sm:$0xff]
        %v250 = vld [vmem:[%s188 + $0x190] sm:$0xff]
        %v251 = vld [vmem:[%s188 + $0x198] sm:$0xff]
        %v252 = vld [vmem:[%s188 + $0x1a0] sm:$0xff]
        %v253 = vld [vmem:[%s188 + $0x1a8] sm:$0xff]
        %v254 = vld [vmem:[%s188 + $0x1b0] sm:$0xff]
        %v255 = vld [vmem:[%s188 + $0x1b8] sm:$0xff]
        %v256 = vld [vmem:[%s188 + $0x1c0] sm:$0xff]
        %v257 = vld [vmem:[%s188 + $0x1c8] sm:$0xff]
        %v258 = vld [vmem:[%s188 + $0x1d0] sm:$0xff]
        %v259 = vld [vmem:[%s188 + $0x1d8] sm:$0xff]
        %v260 = vld [vmem:[%s188 + $0x1e0] sm:$0xff]
        %v261 = vld [vmem:[%s188 + $0x1e8] sm:$0xff]
        %v262 = vld [vmem:[%s188 + $0x1f0] sm:$0xff]
        %v263 = vld [vmem:[%s188 + $0x1f8] sm:$0xff]
        %v264 = vld [vmem:[%s188 + $0x200] sm:$0xff]
        %v265 = vld [vmem:[%s188 + $0x208] sm:$0xff]
        %v266 = vld [vmem:[%s188 + $0x210] sm:$0xff]
        %v267 = vld [vmem:[%s188 + $0x218] sm:$0xff]
        %v268 = vld [vmem:[%s188 + $0x220] sm:$0xff]
        %v269 = vld [vmem:[%s188 + $0x228] sm:$0xff]
        %v270 = vld [vmem:[%s188 + $0x230] sm:$0xff]
        %v271 = vld [vmem:[%s188 + $0x238] sm:$0xff]
        %v272 = vld [vmem:[%s188 + $0x240] sm:$0xff]
        %v273 = vld [vmem:[%s188 + $0x248] sm:$0xff]
        %v274 = vld [vmem:[%s188 + $0x250] sm:$0xff]
        %v275 = vld [vmem:[%s188 + $0x258] sm:$0xff]
        %v276 = vld [vmem:[%s188 + $0x260] sm:$0xff]
        %v277 = vld [vmem:[%s188 + $0x268] sm:$0xff]
        %v278 = vld [vmem:[%s188 + $0x270] sm:$0xff]
        %v279 = vld [vmem:[%s188 + $0x278] sm:$0xff]
        %v280 = vld [vmem:[%s188 + $0x280] sm:$0xff]
        %v281 = vld [vmem:[%s188 + $0x288] sm:$0xff]
        %v282 = vld [vmem:[%s188 + $0x290] sm:$0xff]
        %v283 = vld [vmem:[%s188 + $0x298] sm:$0xff]
        %v284 = vld [vmem:[%s188 + $0x2a0] sm:$0xff]
        %v285 = vld [vmem:[%s188 + $0x2a8] sm:$0xff]
        %v286 = vld [vmem:[%s188 + $0x2b0] sm:$0xff]
        %v287 = vld [vmem:[%s188 + $0x2b8] sm:$0xff]
        %v288 = vld [vmem:[%s188 + $0x2c0] sm:$0xff]
        %v289 = vld [vmem:[%s188 + $0x2c8] sm:$0xff]
        %v290 = vld [vmem:[%s188 + $0x2d0] sm:$0xff]
        %v291 = vld [vmem:[%s188 + $0x2d8] sm:$0xff]
        %v292 = vld [vmem:[%s188 + $0x2e0] sm:$0xff]
        %v293 = vld [vmem:[%s188 + $0x2e8] sm:$0xff]
        %v294 = vld [vmem:[%s188 + $0x2f0] sm:$0xff]
        %v295 = vld [vmem:[%s188 + $0x2f8] sm:$0xff]
        %v296 = vld [vmem:[%s188 + $0x300] sm:$0xff]
        %v297 = vld [vmem:[%s188 + $0x308] sm:$0xff]
        %v298 = vld [vmem:[%s188 + $0x310] sm:$0xff]
        %v299 = vld [vmem:[%s188 + $0x318] sm:$0xff]
        %v300 = vld [vmem:[%s188 + $0x320] sm:$0xff]
        %v301 = vld [vmem:[%s188 + $0x328] sm:$0xff]
        %v302 = vld [vmem:[%s188 + $0x330] sm:$0xff]
        %v303 = vld [vmem:[%s188 + $0x338] sm:$0xff]
        %v304 = vld [vmem:[%s188 + $0x340] sm:$0xff]
        %v305 = vld [vmem:[%s188 + $0x348] sm:$0xff]
        %v306 = vld [vmem:[%s188 + $0x350] sm:$0xff]
        %v307 = vld [vmem:[%s188 + $0x358] sm:$0xff]
        %v308 = vld [vmem:[%s188 + $0x360] sm:$0xff]
        %v309 = vld [vmem:[%s188 + $0x368] sm:$0xff]
        %v310 = vld [vmem:[%s188 + $0x370] sm:$0xff]
        %v311 = vld [vmem:[%s188 + $0x378] sm:$0xff]
        %v312 = vld [vmem:[%s188 + $0x380] sm:$0xff]
        %v313 = vld [vmem:[%s188 + $0x388] sm:$0xff]
        %v314 = vld [vmem:[%s188 + $0x390] sm:$0xff]
        %v315 = vld [vmem:[%s188 + $0x398] sm:$0xff]
        %v316 = vld [vmem:[%s188 + $0x3a0] sm:$0xff]
        %v317 = vld [vmem:[%s188 + $0x3a8] sm:$0xff]
        %v318 = vld [vmem:[%s188 + $0x3b0] sm:$0xff]
        %v319 = vld [vmem:[%s188 + $0x3b8] sm:$0xff]
        %v320 = vld [vmem:[%s188 + $0x3c0] sm:$0xff]
        %v321 = vld [vmem:[%s188 + $0x3c8] sm:$0xff]
        %v322 = vld [vmem:[%s188 + $0x3d0] sm:$0xff]
        %v323 = vld [vmem:[%s188 + $0x3d8] sm:$0xff]
        %v324 = vld [vmem:[%s188 + $0x3e0] sm:$0xff]
        %v325 = vld [vmem:[%s188 + $0x3e8] sm:$0xff]
        %v326 = vld [vmem:[%s188 + $0x3f0] sm:$0xff]
        %v327 = vld [vmem:[%s188 + $0x3f8] sm:$0xff]
        %v328 = vld [vmem:[%s1] sm:$0xff]
        %v329 = vld [vmem:[%s1 + $0x8] sm:$0xff]
        %v330 = vld [vmem:[%s1 + $0x10] sm:$0xff]
        %v331 = vld [vmem:[%s1 + $0x18] sm:$0xff]
        %v332 = vld [vmem:[%s1 + $0x20] sm:$0xff]
        %v333 = vld [vmem:[%s1 + $0x28] sm:$0xff]
        %v334 = vld [vmem:[%s1 + $0x30] sm:$0xff]
        %v335 = vld [vmem:[%s1 + $0x38] sm:$0xff]
        %v336 = vld [vmem:[%s1 + $0x40] sm:$0xff]
        %v337 = vld [vmem:[%s1 + $0x48] sm:$0xff]
        %v338 = vld [vmem:[%s1 + $0x50] sm:$0xff]
        %v339 = vld [vmem:[%s1 + $0x58] sm:$0xff]
        %v340 = vld [vmem:[%s1 + $0x60] sm:$0xff]
        %v341 = vld [vmem:[%s1 + $0x68] sm:$0xff]
        %v342 = vld [vmem:[%s1 + $0x70] sm:$0xff]
        %v343 = vld [vmem:[%s1 + $0x78] sm:$0xff]
        %v344 = vld [vmem:[%s1 + $0x80] sm:$0xff]
        %v345 = vld [vmem:[%s1 + $0x88] sm:$0xff]
        %v346 = vld [vmem:[%s1 + $0x90] sm:$0xff]
        %v347 = vld [vmem:[%s1 + $0x98] sm:$0xff]
        %v348 = vld [vmem:[%s1 + $0xa0] sm:$0xff]
        %v349 = vld [vmem:[%s1 + $0xa8] sm:$0xff]
        %v350 = vld [vmem:[%s1 + $0xb0] sm:$0xff]
        %v351 = vld [vmem:[%s1 + $0xb8] sm:$0xff]
        %v352 = vld [vmem:[%s1 + $0xc0] sm:$0xff]
        %v353 = vld [vmem:[%s2] sm:$0x1]
        %v355 = vlaneseq
        %v356 = vshrl.u32 %v355, 7
        %v357 = vsub.s32 0, %v356
        %v358 = vrot.slane %v353, %v357
        %vm360 = vcmask 588800
        %v362 = vsel %vm360, %v201, 0
        %v365 = vsel %vm360, %v203, 0
        %v368 = vsel %vm360, %v205, 0
        %v371 = vsel %vm360, %v207, 0
        %v374 = vsel %vm360, %v209, 0
        %v377 = vsel %vm360, %v211, 0
        %v380 = vsel %vm360, %v213, 0
        %v383 = vsel %vm360, %v215, 0
        %v386 = vsel %vm360, %v217, 0
        %v389 = vsel %vm360, %v219, 0
        %v392 = vsel %vm360, %v221, 0
        %v395 = vsel %vm360, %v223, 0
        %v398 = vsel %vm360, %v225, 0
        %v401 = vsel %vm360, %v227, 0
        %v404 = vsel %vm360, %v229, 0
        %v407 = vsel %vm360, %v231, 0
        %v410 = vsel %vm360, %v233, 0
        %v413 = vsel %vm360, %v235, 0
        %v416 = vsel %vm360, %v237, 0
        %v419 = vsel %vm360, %v239, 0
        %v422 = vsel %vm360, %v241, 0
        %v425 = vsel %vm360, %v243, 0
        %v428 = vsel %vm360, %v245, 0
        %v431 = vsel %vm360, %v247, 0
        %v434 = vsel %vm360, %v249, 0
        %v437 = vsel %vm360, %v251, 0
        %v440 = vsel %vm360, %v253, 0
        %v443 = vsel %vm360, %v255, 0
        %v446 = vsel %vm360, %v257, 0
        %v449 = vsel %vm360, %v259, 0
        %v452 = vsel %vm360, %v261, 0
        %v455 = vsel %vm360, %v263, 0
        %v458 = vsel %vm360, %v265, 0
        %v461 = vsel %vm360, %v267, 0
        %v464 = vsel %vm360, %v269, 0
        %v467 = vsel %vm360, %v271, 0
        %v470 = vsel %vm360, %v273, 0
        %v473 = vsel %vm360, %v275, 0
        %v476 = vsel %vm360, %v277, 0
        %v479 = vsel %vm360, %v279, 0
        %v482 = vsel %vm360, %v281, 0
        %v485 = vsel %vm360, %v283, 0
        %v488 = vsel %vm360, %v285, 0
        %v491 = vsel %vm360, %v287, 0
        %v494 = vsel %vm360, %v289, 0
        %v497 = vsel %vm360, %v291, 0
        %v500 = vsel %vm360, %v293, 0
        %v503 = vsel %vm360, %v295, 0
        %v506 = vsel %vm360, %v297, 0
        %v509 = vsel %vm360, %v299, 0
        %v512 = vsel %vm360, %v301, 0
        %v515 = vsel %vm360, %v303, 0
        %v518 = vsel %vm360, %v305, 0
        %v521 = vsel %vm360, %v307, 0
        %v524 = vsel %vm360, %v309, 0
        %v527 = vsel %vm360, %v311, 0
        %v530 = vsel %vm360, %v313, 0
        %v533 = vsel %vm360, %v315, 0
        %v536 = vsel %vm360, %v317, 0
        %v539 = vsel %vm360, %v319, 0
        %v542 = vsel %vm360, %v321, 0
        %v545 = vsel %vm360, %v323, 0
        %v548 = vsel %vm360, %v325, 0
        %v551 = vsel %vm360, %v327, 0
        %553 = vmatprep.subr.mxu0 0.0
        %554 = vmatpush1.msra.mxu0 %v343
        %555 = vmatprep.subr.mxu0 0.0
        %556 = vmatpush1.msra.mxu0 %v342
        %557 = vmatprep.subr.mxu0 0.0
        %558 = vmatpush1.msra.mxu0 %v341
        %559 = vmatprep.subr.mxu0 0.0
        %560 = vmatpush1.msra.mxu0 %v340
        %561 = vmatprep.subr.mxu0 0.0
        %562 = vmatpush1.msra.mxu0 %v339
        %563 = vmatprep.subr.mxu0 0.0
        %564 = vmatpush1.msra.mxu0 %v338
        %565 = vmatprep.subr.mxu0 0.0
        %566 = vmatpush1.msra.mxu0 %v337
        %567 = vmatprep.subr.mxu0 0.0
        %568 = vmatpush1.msra.mxu0 %v336
        %569 = vmatprep.subr.mxu0 0.0
        %570 = vmatpush1.msra.mxu0 %v335
        %571 = vmatprep.subr.mxu0 0.0
        %572 = vmatpush1.msra.mxu0 %v334
        %573 = vmatprep.subr.mxu0 0.0
        %574 = vmatpush1.msra.mxu0 %v333
        %575 = vmatprep.subr.mxu0 0.0
        %576 = vmatpush1.msra.mxu0 %v332
        %577 = vmatprep.subr.mxu0 0.0
        %578 = vmatpush1.msra.mxu0 %v331
        %579 = vmatprep.subr.mxu0 0.0
        %580 = vmatpush1.msra.mxu0 %v330
        %581 = vmatprep.subr.mxu0 0.0
        %582 = vmatpush1.msra.mxu0 %v329
        %583 = vmatprep.subr.mxu0 0.0
        %584 = vmatpush1.msra.mxu0 %v328
        %585 = vmatprep.subr.mxu0 0.0
        %586 = vmatpush2.msra.mxu0 0.0
        %587 = vmatprep.subr.mxu0 0.0
        %588 = vmatpush2.msra.mxu0 0.0
        %589 = vmatprep.subr.mxu0 0.0
        %590 = vmatpush2.msra.mxu0 0.0
        %591 = vmatprep.subr.mxu0 0.0
        %592 = vmatpush2.msra.mxu0 0.0
        %593 = vmatprep.subr.mxu0 0.0
        %594 = vmatpush2.msra.mxu0 0.0
        %595 = vmatprep.subr.mxu0 0.0
        %596 = vmatpush2.msra.mxu0 0.0
        %597 = vmatprep.subr.mxu0 0.0
        %598 = vmatpush2.msra.mxu0 0.0
        %599 = vmatprep.subr.mxu0 0.0
        %600 = vmatpush2.msra.mxu0 %v352
        %601 = vmatprep.subr.mxu0 0.0
        %602 = vmatpush2.msra.mxu0 %v351
        %603 = vmatprep.subr.mxu0 0.0
        %604 = vmatpush2.msra.mxu0 %v350
        %605 = vmatprep.subr.mxu0 0.0
        %606 = vmatpush2.msra.mxu0 %v349
        %607 = vmatprep.subr.mxu0 0.0
        %608 = vmatpush2.msra.mxu0 %v348
        %609 = vmatprep.subr.mxu0 0.0
        %610 = vmatpush2.msra.mxu0 %v347
        %611 = vmatprep.subr.mxu0 0.0
        %612 = vmatpush2.msra.mxu0 %v346
        %613 = vmatprep.subr.mxu0 0.0
        %614 = vmatpush2.msra.mxu0 %v345
        %615 = vmatprep.subr.mxu0 0.0
        %616 = vmatpush2.msra.mxu0 %v344
        %617 = vmatprep.mubr.f32.mxu0 %v362
        %618 = vmatmul.mubr.f32.gmra.mxu0 %v200
        %v619 = vpop.f32.mrf.mxu0
        %v620 = vadd.f32 %v358, %v619
        %v621 = vpop.f32.mrf.mxu0
        %622 = vmatprep.mubr.f32.mxu0 %v365
        %623 = vmatmul.mubr.f32.gmra.mxu0 %v202
        %v624 = vpop.f32.mrf.mxu0
        %v625 = vadd.f32 %v358, %v624
        %v626 = vpop.f32.mrf.mxu0
        %627 = vmatprep.mubr.f32.mxu0 %v368
        %628 = vmatmul.mubr.f32.gmra.mxu0 %v204
        %v629 = vpop.f32.mrf.mxu0
        %v630 = vadd.f32 %v358, %v629
        %v631 = vpop.f32.mrf.mxu0
        %632 = vmatprep.mubr.f32.mxu0 %v371
        %633 = vmatmul.mubr.f32.gmra.mxu0 %v206
        %v634 = vpop.f32.mrf.mxu0
        %v635 = vadd.f32 %v358, %v634
        %v636 = vpop.f32.mrf.mxu0
        %637 = vmatprep.mubr.f32.mxu0 %v374
        %638 = vmatmul.mubr.f32.gmra.mxu0 %v208
        %v639 = vpop.f32.mrf.mxu0
        %v640 = vadd.f32 %v358, %v639
        %v641 = vpop.f32.mrf.mxu0
        %642 = vmatprep.mubr.f32.mxu0 %v377
        %643 = vmatmul.mubr.f32.gmra.mxu0 %v210
        %v644 = vpop.f32.mrf.mxu0
        %v645 = vadd.f32 %v358, %v644
        %v646 = vpop.f32.mrf.mxu0
        %647 = vmatprep.mubr.f32.mxu0 %v380
        %648 = vmatmul.mubr.f32.gmra.mxu0 %v212
        %v649 = vpop.f32.mrf.mxu0
        %v650 = vadd.f32 %v358, %v649
        %v651 = vpop.f32.mrf.mxu0
        %652 = vmatprep.mubr.f32.mxu0 %v383
        %653 = vmatmul.mubr.f32.gmra.mxu0 %v214
        %v654 = vpop.f32.mrf.mxu0
        %v655 = vadd.f32 %v358, %v654
        %v656 = vpop.f32.mrf.mxu0
        %657 = vmatprep.mubr.f32.mxu0 %v386
        %658 = vmatmul.mubr.f32.gmra.mxu0 %v216
        %v659 = vpop.f32.mrf.mxu0
        %v660 = vadd.f32 %v358, %v659
        %v661 = vpop.f32.mrf.mxu0
        %662 = vmatprep.mubr.f32.mxu0 %v389
        %663 = vmatmul.mubr.f32.gmra.mxu0 %v218
        %v664 = vpop.f32.mrf.mxu0
        %v665 = vadd.f32 %v358, %v664
        %v666 = vpop.f32.mrf.mxu0
        %667 = vmatprep.mubr.f32.mxu0 %v392
        %668 = vmatmul.mubr.f32.gmra.mxu0 %v220
        %v669 = vpop.f32.mrf.mxu0
        %v670 = vadd.f32 %v358, %v669
        %v671 = vpop.f32.mrf.mxu0
        %672 = vmatprep.mubr.f32.mxu0 %v395
        %673 = vmatmul.mubr.f32.gmra.mxu0 %v222
        %v674 = vpop.f32.mrf.mxu0
        %v675 = vadd.f32 %v358, %v674
        %v676 = vpop.f32.mrf.mxu0
        %677 = vmatprep.mubr.f32.mxu0 %v398
        %678 = vmatmul.mubr.f32.gmra.mxu0 %v224
        %v679 = vpop.f32.mrf.mxu0
        %v680 = vadd.f32 %v358, %v679
        %v681 = vpop.f32.mrf.mxu0
        %682 = vmatprep.mubr.f32.mxu0 %v401
        %683 = vmatmul.mubr.f32.gmra.mxu0 %v226
        %v684 = vpop.f32.mrf.mxu0
        %v685 = vadd.f32 %v358, %v684
        %v686 = vpop.f32.mrf.mxu0
        %687 = vmatprep.mubr.f32.mxu0 %v404
        %688 = vmatmul.mubr.f32.gmra.mxu0 %v228
        %v689 = vpop.f32.mrf.mxu0
        %v690 = vadd.f32 %v358, %v689
        %v691 = vpop.f32.mrf.mxu0
        %692 = vmatprep.mubr.f32.mxu0 %v407
        %693 = vmatmul.mubr.f32.gmra.mxu0 %v230
        %v694 = vpop.f32.mrf.mxu0
        %v695 = vadd.f32 %v358, %v694
        %v696 = vpop.f32.mrf.mxu0
        %697 = vmatprep.mubr.f32.mxu0 %v410
        %698 = vmatmul.mubr.f32.gmra.mxu0 %v232
        %v699 = vpop.f32.mrf.mxu0
        %v700 = vadd.f32 %v358, %v699
        %v701 = vpop.f32.mrf.mxu0
        %702 = vmatprep.mubr.f32.mxu0 %v413
        %703 = vmatmul.mubr.f32.gmra.mxu0 %v234
        %v704 = vpop.f32.mrf.mxu0
        %v705 = vadd.f32 %v358, %v704
        %v706 = vpop.f32.mrf.mxu0
        %707 = vmatprep.mubr.f32.mxu0 %v416
        %708 = vmatmul.mubr.f32.gmra.mxu0 %v236
        %v709 = vpop.f32.mrf.mxu0
        %v710 = vadd.f32 %v358, %v709
        %v711 = vpop.f32.mrf.mxu0
        %712 = vmatprep.mubr.f32.mxu0 %v419
        %713 = vmatmul.mubr.f32.gmra.mxu0 %v238
        %v714 = vpop.f32.mrf.mxu0
        %v715 = vadd.f32 %v358, %v714
        %v716 = vpop.f32.mrf.mxu0
        %717 = vmatprep.mubr.f32.mxu0 %v422
        %718 = vmatmul.mubr.f32.gmra.mxu0 %v240
        %v719 = vpop.f32.mrf.mxu0
        %v720 = vadd.f32 %v358, %v719
        %v721 = vpop.f32.mrf.mxu0
        %722 = vmatprep.mubr.f32.mxu0 %v425
        %723 = vmatmul.mubr.f32.gmra.mxu0 %v242
        %v724 = vpop.f32.mrf.mxu0
        %v725 = vadd.f32 %v358, %v724
        %v726 = vpop.f32.mrf.mxu0
        %727 = vmatprep.mubr.f32.mxu0 %v428
        %728 = vmatmul.mubr.f32.gmra.mxu0 %v244
        %v729 = vpop.f32.mrf.mxu0
        %v730 = vadd.f32 %v358, %v729
        %v731 = vpop.f32.mrf.mxu0
        %732 = vmatprep.mubr.f32.mxu0 %v431
        %733 = vmatmul.mubr.f32.gmra.mxu0 %v246
        %v734 = vpop.f32.mrf.mxu0
        %v735 = vadd.f32 %v358, %v734
        %v736 = vpop.f32.mrf.mxu0
        %737 = vmatprep.mubr.f32.mxu0 %v434
        %738 = vmatmul.mubr.f32.gmra.mxu0 %v248
        %v739 = vpop.f32.mrf.mxu0
        %v740 = vadd.f32 %v358, %v739
        %v741 = vpop.f32.mrf.mxu0
        %742 = vmatprep.mubr.f32.mxu0 %v437
        %743 = vmatmul.mubr.f32.gmra.mxu0 %v250
        %v744 = vpop.f32.mrf.mxu0
        %v745 = vadd.f32 %v358, %v744
        %v746 = vpop.f32.mrf.mxu0
        %747 = vmatprep.mubr.f32.mxu0 %v440
        %748 = vmatmul.mubr.f32.gmra.mxu0 %v252
        %v749 = vpop.f32.mrf.mxu0
        %v750 = vadd.f32 %v358, %v749
        %v751 = vpop.f32.mrf.mxu0
        %752 = vmatprep.mubr.f32.mxu0 %v443
        %753 = vmatmul.mubr.f32.gmra.mxu0 %v254
        %v754 = vpop.f32.mrf.mxu0
        %v755 = vadd.f32 %v358, %v754
        %v756 = vpop.f32.mrf.mxu0
        %757 = vmatprep.mubr.f32.mxu0 %v446
        %758 = vmatmul.mubr.f32.gmra.mxu0 %v256
        %v759 = vpop.f32.mrf.mxu0
        %v760 = vadd.f32 %v358, %v759
        %v761 = vpop.f32.mrf.mxu0
        %762 = vmatprep.mubr.f32.mxu0 %v449
        %763 = vmatmul.mubr.f32.gmra.mxu0 %v258
        %v764 = vpop.f32.mrf.mxu0
        %v765 = vadd.f32 %v358, %v764
        %v766 = vpop.f32.mrf.mxu0
        %767 = vmatprep.mubr.f32.mxu0 %v452
        %768 = vmatmul.mubr.f32.gmra.mxu0 %v260
        %v769 = vpop.f32.mrf.mxu0
        %v770 = vadd.f32 %v358, %v769
        %v771 = vpop.f32.mrf.mxu0
        %772 = vmatprep.mubr.f32.mxu0 %v455
        %773 = vmatmul.mubr.f32.gmra.mxu0 %v262
        %v774 = vpop.f32.mrf.mxu0
        %v775 = vadd.f32 %v358, %v774
        %v776 = vpop.f32.mrf.mxu0
        %777 = vmatprep.mubr.f32.mxu0 %v458
        %778 = vmatmul.mubr.f32.gmra.mxu0 %v264
        %v779 = vpop.f32.mrf.mxu0
        %v780 = vadd.f32 %v358, %v779
        %v781 = vpop.f32.mrf.mxu0
        %782 = vmatprep.mubr.f32.mxu0 %v461
        %783 = vmatmul.mubr.f32.gmra.mxu0 %v266
        %v784 = vpop.f32.mrf.mxu0
        %v785 = vadd.f32 %v358, %v784
        %v786 = vpop.f32.mrf.mxu0
        %787 = vmatprep.mubr.f32.mxu0 %v464
        %788 = vmatmul.mubr.f32.gmra.mxu0 %v268
        %v789 = vpop.f32.mrf.mxu0
        %v790 = vadd.f32 %v358, %v789
        %v791 = vpop.f32.mrf.mxu0
        %792 = vmatprep.mubr.f32.mxu0 %v467
        %793 = vmatmul.mubr.f32.gmra.mxu0 %v270
        %v794 = vpop.f32.mrf.mxu0
        %v795 = vadd.f32 %v358, %v794
        %v796 = vpop.f32.mrf.mxu0
        %797 = vmatprep.mubr.f32.mxu0 %v470
        %798 = vmatmul.mubr.f32.gmra.mxu0 %v272
        %v799 = vpop.f32.mrf.mxu0
        %v800 = vadd.f32 %v358, %v799
        %v801 = vpop.f32.mrf.mxu0
        %802 = vmatprep.mubr.f32.mxu0 %v473
        %803 = vmatmul.mubr.f32.gmra.mxu0 %v274
        %v804 = vpop.f32.mrf.mxu0
        %v805 = vadd.f32 %v358, %v804
        %v806 = vpop.f32.mrf.mxu0
        %807 = vmatprep.mubr.f32.mxu0 %v476
        %808 = vmatmul.mubr.f32.gmra.mxu0 %v276
        %v809 = vpop.f32.mrf.mxu0
        %v810 = vadd.f32 %v358, %v809
        %v811 = vpop.f32.mrf.mxu0
        %812 = vmatprep.mubr.f32.mxu0 %v479
        %813 = vmatmul.mubr.f32.gmra.mxu0 %v278
        %v814 = vpop.f32.mrf.mxu0
        %v815 = vadd.f32 %v358, %v814
        %v816 = vpop.f32.mrf.mxu0
        %817 = vmatprep.mubr.f32.mxu0 %v482
        %818 = vmatmul.mubr.f32.gmra.mxu0 %v280
        %v819 = vpop.f32.mrf.mxu0
        %v820 = vadd.f32 %v358, %v819
        %v821 = vpop.f32.mrf.mxu0
        %822 = vmatprep.mubr.f32.mxu0 %v485
        %823 = vmatmul.mubr.f32.gmra.mxu0 %v282
        %v824 = vpop.f32.mrf.mxu0
        %v825 = vadd.f32 %v358, %v824
        %v826 = vpop.f32.mrf.mxu0
        %827 = vmatprep.mubr.f32.mxu0 %v488
        %828 = vmatmul.mubr.f32.gmra.mxu0 %v284
        %v829 = vpop.f32.mrf.mxu0
        %v830 = vadd.f32 %v358, %v829
        %v831 = vpop.f32.mrf.mxu0
        %832 = vmatprep.mubr.f32.mxu0 %v491
        %833 = vmatmul.mubr.f32.gmra.mxu0 %v286
        %v834 = vpop.f32.mrf.mxu0
        %v835 = vadd.f32 %v358, %v834
        %v836 = vpop.f32.mrf.mxu0
        %837 = vmatprep.mubr.f32.mxu0 %v494
        %838 = vmatmul.mubr.f32.gmra.mxu0 %v288
        %v839 = vpop.f32.mrf.mxu0
        %v840 = vadd.f32 %v358, %v839
        %v841 = vpop.f32.mrf.mxu0
        %842 = vmatprep.mubr.f32.mxu0 %v497
        %843 = vmatmul.mubr.f32.gmra.mxu0 %v290
        %v844 = vpop.f32.mrf.mxu0
        %v845 = vadd.f32 %v358, %v844
        %v846 = vpop.f32.mrf.mxu0
        %847 = vmatprep.mubr.f32.mxu0 %v500
        %848 = vmatmul.mubr.f32.gmra.mxu0 %v292
        %v849 = vpop.f32.mrf.mxu0
        %v850 = vadd.f32 %v358, %v849
        %v851 = vpop.f32.mrf.mxu0
        %852 = vmatprep.mubr.f32.mxu0 %v503
        %853 = vmatmul.mubr.f32.gmra.mxu0 %v294
        %v854 = vpop.f32.mrf.mxu0
        %v855 = vadd.f32 %v358, %v854
        %v856 = vpop.f32.mrf.mxu0
        %857 = vmatprep.mubr.f32.mxu0 %v506
        %858 = vmatmul.mubr.f32.gmra.mxu0 %v296
        %v859 = vpop.f32.mrf.mxu0
        %v860 = vadd.f32 %v358, %v859
        %v861 = vpop.f32.mrf.mxu0
        %862 = vmatprep.mubr.f32.mxu0 %v509
        %863 = vmatmul.mubr.f32.gmra.mxu0 %v298
        %v864 = vpop.f32.mrf.mxu0
        %v865 = vadd.f32 %v358, %v864
        %v866 = vpop.f32.mrf.mxu0
        %867 = vmatprep.mubr.f32.mxu0 %v512
        %868 = vmatmul.mubr.f32.gmra.mxu0 %v300
        %v869 = vpop.f32.mrf.mxu0
        %v870 = vadd.f32 %v358, %v869
        %v871 = vpop.f32.mrf.mxu0
        %872 = vmatprep.mubr.f32.mxu0 %v515
        %873 = vmatmul.mubr.f32.gmra.mxu0 %v302
        %v874 = vpop.f32.mrf.mxu0
        %v875 = vadd.f32 %v358, %v874
        %v876 = vpop.f32.mrf.mxu0
        %877 = vmatprep.mubr.f32.mxu0 %v518
        %878 = vmatmul.mubr.f32.gmra.mxu0 %v304
        %v879 = vpop.f32.mrf.mxu0
        %v880 = vadd.f32 %v358, %v879
        %v881 = vpop.f32.mrf.mxu0
        %882 = vmatprep.mubr.f32.mxu0 %v521
        %883 = vmatmul.mubr.f32.gmra.mxu0 %v306
        %v884 = vpop.f32.mrf.mxu0
        %v885 = vadd.f32 %v358, %v884
        %v886 = vpop.f32.mrf.mxu0
        %887 = vmatprep.mubr.f32.mxu0 %v524
        %888 = vmatmul.mubr.f32.gmra.mxu0 %v308
        %v889 = vpop.f32.mrf.mxu0
        %v890 = vadd.f32 %v358, %v889
        %v891 = vpop.f32.mrf.mxu0
        %892 = vmatprep.mubr.f32.mxu0 %v527
        %893 = vmatmul.mubr.f32.gmra.mxu0 %v310
        %v894 = vpop.f32.mrf.mxu0
        %v895 = vadd.f32 %v358, %v894
        %v896 = vpop.f32.mrf.mxu0
        %897 = vmatprep.mubr.f32.mxu0 %v530
        %898 = vmatmul.mubr.f32.gmra.mxu0 %v312
        %v899 = vpop.f32.mrf.mxu0
        %v900 = vadd.f32 %v358, %v899
        %v901 = vpop.f32.mrf.mxu0
        %902 = vmatprep.mubr.f32.mxu0 %v533
        %903 = vmatmul.mubr.f32.gmra.mxu0 %v314
        %v904 = vpop.f32.mrf.mxu0
        %v905 = vadd.f32 %v358, %v904
        %v906 = vpop.f32.mrf.mxu0
        %907 = vmatprep.mubr.f32.mxu0 %v536
        %908 = vmatmul.mubr.f32.gmra.mxu0 %v316
        %v909 = vpop.f32.mrf.mxu0
        %v910 = vadd.f32 %v358, %v909
        %v911 = vpop.f32.mrf.mxu0
        %912 = vmatprep.mubr.f32.mxu0 %v539
        %913 = vmatmul.mubr.f32.gmra.mxu0 %v318
        %v914 = vpop.f32.mrf.mxu0
        %v915 = vadd.f32 %v358, %v914
        %v916 = vpop.f32.mrf.mxu0
        %917 = vmatprep.mubr.f32.mxu0 %v542
        %918 = vmatmul.mubr.f32.gmra.mxu0 %v320
        %v919 = vpop.f32.mrf.mxu0
        %v920 = vadd.f32 %v358, %v919
        %v921 = vpop.f32.mrf.mxu0
        %922 = vmatprep.mubr.f32.mxu0 %v545
        %923 = vmatmul.mubr.f32.gmra.mxu0 %v322
        %v924 = vpop.f32.mrf.mxu0
        %v925 = vadd.f32 %v358, %v924
        %v926 = vpop.f32.mrf.mxu0
        %927 = vmatprep.mubr.f32.mxu0 %v548
        %928 = vmatmul.mubr.f32.gmra.mxu0 %v324
        %v929 = vpop.f32.mrf.mxu0
        %v930 = vadd.f32 %v358, %v929
        %v931 = vpop.f32.mrf.mxu0
        %932 = vmatprep.mubr.f32.mxu0 %v551
        %933 = vmatmul.mubr.f32.gmra.mxu0 %v326
        %v934 = vpop.f32.mrf.mxu0
        %v935 = vadd.f32 %v358, %v934
        %v936 = vpop.f32.mrf.mxu0
        %937 = vdwg.mxu0
        %v938 = vmax.f32 %v620, 0.0
        %v939 = vmax.f32 %v625, 0.0
        %v940 = vmax.f32 %v630, 0.0
        %v941 = vmax.f32 %v635, 0.0
        %v942 = vmax.f32 %v640, 0.0
        %v943 = vmax.f32 %v645, 0.0
        %v944 = vmax.f32 %v650, 0.0
        %v945 = vmax.f32 %v655, 0.0
        %v946 = vmax.f32 %v660, 0.0
        %v947 = vmax.f32 %v665, 0.0
        %v948 = vmax.f32 %v670, 0.0
        %v949 = vmax.f32 %v675, 0.0
        %v950 = vmax.f32 %v680, 0.0
        %v951 = vmax.f32 %v685, 0.0
        %v952 = vmax.f32 %v690, 0.0
        %v953 = vmax.f32 %v695, 0.0
        %v954 = vmax.f32 %v700, 0.0
        %v955 = vmax.f32 %v705, 0.0
        %v956 = vmax.f32 %v710, 0.0
        %v957 = vmax.f32 %v715, 0.0
        %v958 = vmax.f32 %v720, 0.0
        %v959 = vmax.f32 %v725, 0.0
        %v960 = vmax.f32 %v730, 0.0
        %v961 = vmax.f32 %v735, 0.0
        %v962 = vmax.f32 %v740, 0.0
        %v963 = vmax.f32 %v745, 0.0
        %v964 = vmax.f32 %v750, 0.0
        %v965 = vmax.f32 %v755, 0.0
        %v966 = vmax.f32 %v760, 0.0
        %v967 = vmax.f32 %v765, 0.0
        %v968 = vmax.f32 %v770, 0.0
        %v969 = vmax.f32 %v775, 0.0
        %v970 = vmax.f32 %v780, 0.0
        %v971 = vmax.f32 %v785, 0.0
        %v972 = vmax.f32 %v790, 0.0
        %v973 = vmax.f32 %v795, 0.0
        %v974 = vmax.f32 %v800, 0.0
        %v975 = vmax.f32 %v805, 0.0
        %v976 = vmax.f32 %v810, 0.0
        %v977 = vmax.f32 %v815, 0.0
        %v978 = vmax.f32 %v820, 0.0
        %v979 = vmax.f32 %v825, 0.0
        %v980 = vmax.f32 %v830, 0.0
        %v981 = vmax.f32 %v835, 0.0
        %v982 = vmax.f32 %v840, 0.0
        %v983 = vmax.f32 %v845, 0.0
        %v984 = vmax.f32 %v850, 0.0
        %v985 = vmax.f32 %v855, 0.0
        %v986 = vmax.f32 %v860, 0.0
        %v987 = vmax.f32 %v865, 0.0
        %v988 = vmax.f32 %v870, 0.0
        %v989 = vmax.f32 %v875, 0.0
        %v990 = vmax.f32 %v880, 0.0
        %v991 = vmax.f32 %v885, 0.0
        %v992 = vmax.f32 %v890, 0.0
        %v993 = vmax.f32 %v895, 0.0
        %v994 = vmax.f32 %v900, 0.0
        %v995 = vmax.f32 %v905, 0.0
        %v996 = vmax.f32 %v910, 0.0
        %v997 = vmax.f32 %v915, 0.0
        %v998 = vmax.f32 %v920, 0.0
        %v999 = vmax.f32 %v925, 0.0
        %v1000 = vmax.f32 %v930, 0.0
        %v1001 = vmax.f32 %v935, 0.0
        %vm1002 = vcmask 89088
        %1003 = vst.msk [vmem:[%s177] sm:$0xff] %vm1002, %v938
        %1004 = vst.msk [vmem:[%s177 + $0x8] sm:$0xff] %vm1002, %v939
        %1005 = vst.msk [vmem:[%s177 + $0x10] sm:$0xff] %vm1002, %v940
        %1006 = vst.msk [vmem:[%s177 + $0x18] sm:$0xff] %vm1002, %v941
        %1007 = vst.msk [vmem:[%s177 + $0x20] sm:$0xff] %vm1002, %v942
        %1008 = vst.msk [vmem:[%s177 + $0x28] sm:$0xff] %vm1002, %v943
        %1009 = vst.msk [vmem:[%s177 + $0x30] sm:$0xff] %vm1002, %v944
        %1010 = vst.msk [vmem:[%s177 + $0x38] sm:$0xff] %vm1002, %v945
        %1011 = vst.msk [vmem:[%s177 + $0x40] sm:$0xff] %vm1002, %v946
        %1012 = vst.msk [vmem:[%s177 + $0x48] sm:$0xff] %vm1002, %v947
        %1013 = vst.msk [vmem:[%s177 + $0x50] sm:$0xff] %vm1002, %v948
        %1014 = vst.msk [vmem:[%s177 + $0x58] sm:$0xff] %vm1002, %v949
        %1015 = vst.msk [vmem:[%s177 + $0x60] sm:$0xff] %vm1002, %v950
        %1016 = vst.msk [vmem:[%s177 + $0x68] sm:$0xff] %vm1002, %v951
        %1017 = vst.msk [vmem:[%s177 + $0x70] sm:$0xff] %vm1002, %v952
        %1018 = vst.msk [vmem:[%s177 + $0x78] sm:$0xff] %vm1002, %v953
        %1019 = vst.msk [vmem:[%s177 + $0x80] sm:$0xff] %vm1002, %v954
        %1020 = vst.msk [vmem:[%s177 + $0x88] sm:$0xff] %vm1002, %v955
        %1021 = vst.msk [vmem:[%s177 + $0x90] sm:$0xff] %vm1002, %v956
        %1022 = vst.msk [vmem:[%s177 + $0x98] sm:$0xff] %vm1002, %v957
        %1023 = vst.msk [vmem:[%s177 + $0xa0] sm:$0xff] %vm1002, %v958
        %1024 = vst.msk [vmem:[%s177 + $0xa8] sm:$0xff] %vm1002, %v959
        %1025 = vst.msk [vmem:[%s177 + $0xb0] sm:$0xff] %vm1002, %v960
        %1026 = vst.msk [vmem:[%s177 + $0xb8] sm:$0xff] %vm1002, %v961
        %1027 = vst.msk [vmem:[%s177 + $0xc0] sm:$0xff] %vm1002, %v962
        %1028 = vst.msk [vmem:[%s177 + $0xc8] sm:$0xff] %vm1002, %v963
        %1029 = vst.msk [vmem:[%s177 + $0xd0] sm:$0xff] %vm1002, %v964
        %1030 = vst.msk [vmem:[%s177 + $0xd8] sm:$0xff] %vm1002, %v965
        %1031 = vst.msk [vmem:[%s177 + $0xe0] sm:$0xff] %vm1002, %v966
        %1032 = vst.msk [vmem:[%s177 + $0xe8] sm:$0xff] %vm1002, %v967
        %1033 = vst.msk [vmem:[%s177 + $0xf0] sm:$0xff] %vm1002, %v968
        %1034 = vst.msk [vmem:[%s177 + $0xf8] sm:$0xff] %vm1002, %v969
        %1035 = vst.msk [vmem:[%s177 + $0x100] sm:$0xff] %vm1002, %v970
        %1036 = vst.msk [vmem:[%s177 + $0x108] sm:$0xff] %vm1002, %v971
        %1037 = vst.msk [vmem:[%s177 + $0x110] sm:$0xff] %vm1002, %v972
        %1038 = vst.msk [vmem:[%s177 + $0x118] sm:$0xff] %vm1002, %v973
        %1039 = vst.msk [vmem:[%s177 + $0x120] sm:$0xff] %vm1002, %v974
        %1040 = vst.msk [vmem:[%s177 + $0x128] sm:$0xff] %vm1002, %v975
        %1041 = vst.msk [vmem:[%s177 + $0x130] sm:$0xff] %vm1002, %v976
        %1042 = vst.msk [vmem:[%s177 + $0x138] sm:$0xff] %vm1002, %v977
        %1043 = vst.msk [vmem:[%s177 + $0x140] sm:$0xff] %vm1002, %v978
        %1044 = vst.msk [vmem:[%s177 + $0x148] sm:$0xff] %vm1002, %v979
        %1045 = vst.msk [vmem:[%s177 + $0x150] sm:$0xff] %vm1002, %v980
        %1046 = vst.msk [vmem:[%s177 + $0x158] sm:$0xff] %vm1002, %v981
        %1047 = vst.msk [vmem:[%s177 + $0x160] sm:$0xff] %vm1002, %v982
        %1048 = vst.msk [vmem:[%s177 + $0x168] sm:$0xff] %vm1002, %v983
        %1049 = vst.msk [vmem:[%s177 + $0x170] sm:$0xff] %vm1002, %v984
        %1050 = vst.msk [vmem:[%s177 + $0x178] sm:$0xff] %vm1002, %v985
        %1051 = vst.msk [vmem:[%s177 + $0x180] sm:$0xff] %vm1002, %v986
        %1052 = vst.msk [vmem:[%s177 + $0x188] sm:$0xff] %vm1002, %v987
        %1053 = vst.msk [vmem:[%s177 + $0x190] sm:$0xff] %vm1002, %v988
        %1054 = vst.msk [vmem:[%s177 + $0x198] sm:$0xff] %vm1002, %v989
        %1055 = vst.msk [vmem:[%s177 + $0x1a0] sm:$0xff] %vm1002, %v990
        %1056 = vst.msk [vmem:[%s177 + $0x1a8] sm:$0xff] %vm1002, %v991
        %1057 = vst.msk [vmem:[%s177 + $0x1b0] sm:$0xff] %vm1002, %v992
        %1058 = vst.msk [vmem:[%s177 + $0x1b8] sm:$0xff] %vm1002, %v993
        %1059 = vst.msk [vmem:[%s177 + $0x1c0] sm:$0xff] %vm1002, %v994
        %1060 = vst.msk [vmem:[%s177 + $0x1c8] sm:$0xff] %vm1002, %v995
        %1061 = vst.msk [vmem:[%s177 + $0x1d0] sm:$0xff] %vm1002, %v996
        %1062 = vst.msk [vmem:[%s177 + $0x1d8] sm:$0xff] %vm1002, %v997
        %1063 = vst.msk [vmem:[%s177 + $0x1e0] sm:$0xff] %vm1002, %v998
        %1064 = vst.msk [vmem:[%s177 + $0x1e8] sm:$0xff] %vm1002, %v999
        %1065 = vst.msk [vmem:[%s177 + $0x1f0] sm:$0xff] %vm1002, %v1000
        %1066 = vst.msk [vmem:[%s177 + $0x1f8] sm:$0xff] %vm1002, %v1001
        %s1067 = sand.u32 %s90, 1
        %s1068 = sand.u32 %s90, 1
        %s1069 = smul.addr %s1068, 512
        %s1070 = scalar_lea.vmem [#allocation2], %s1069
        // Predicated region
        $region33: #{teacher_end_model_forward.1} parent=31 // pred_check
          %p1071 = pneg %p100
        $region34: #{teacher_end_model_forward.1} parent=31 // pred_check_branch
          %1073 = sbr.rel (%p1071) target = $region36
        $region35: #{teacher_end_model_forward.1} parent=31 // pred_region
          %s1074 = smul.u32 64, %s14
          %s1075 = ssub.s32 130, %s1074
          %p1076 = scmp.lt.s32.totalorder %s1075, 64
          %s1077 = scalar_select %p1076, %s1075, 64
          %s1078 = smul.u32 128, %s1077
          %p1079 = scmp.ne.s32.totalorder 0, %s1078
          %s1080 = smul.addr %s1074, 8
          %s1081 = scalar_lea.vmem %s3, %s1080
          // Predicated region
          $region37: #{teacher_end_model_forward.1} parent=35 // pred_check
            %p1082 = pneg %p1079
          $region38: #{teacher_end_model_forward.1} parent=35 // pred_check_branch
            %1084 = sbr.rel (%p1082) target = $region40
          $region39: #{teacher_end_model_forward.1} parent=35 // pred_region
            // Predicated region
            $region41: #{teacher_end_model_forward.1} parent=39 // pred_check
              _
            $region42: #{teacher_end_model_forward.1} parent=39 // pred_check_branch
              %1086 = sbr.rel (0) target = $region44
            $region43: #{teacher_end_model_forward.1} parent=39 // pred_region
              // Predicated region
              $region63: #{teacher_end_model_forward.1} parent=43 // pred_check
                _
              $region64: #{teacher_end_model_forward.1} parent=43 // pred_check_branch
                %1262 = sbr.rel (0) target = $region66
              $region65: #{teacher_end_model_forward.1} parent=43 // pred_region
                %s1263 = sshrl.u32 %s1077, 6
                // While loop
                $region67: #{teacher_end_model_forward.1} parent=65 // loop_pre_header
                  _
                $region68: #{teacher_end_model_forward.1} parent=65 // loop_header
                  %s1265 = sphi 0, %s1267
                  %p1266 = scmp.ge.s32.totalorder %s1265, %s1263
                  %s1270 = sphi 0, %s1403
                  %s1271 = sphi %s1070, %s1406
                  %s1272 = sphi %s1081, %s1407
                $region69: #{teacher_end_model_forward.1} parent=65 // loop_header_branch
                  %1269 = sbr.rel (%p1266) target = $region73
                $region70: #{teacher_end_model_forward.1} parent=65 // loop_body
                  %v1273 = vld [vmem:[%s1271] sm:$0xff]
                  %1274 = vst [vmem:[%s1272] sm:$0xff] %v1273
                  %v1275 = vld [vmem:[%s1271 + $0x8] sm:$0xff]
                  %1276 = vst [vmem:[%s1272 + $0x8] sm:$0xff] %v1275
                  %v1277 = vld [vmem:[%s1271 + $0x10] sm:$0xff]
                  %1278 = vst [vmem:[%s1272 + $0x10] sm:$0xff] %v1277
                  %v1279 = vld [vmem:[%s1271 + $0x18] sm:$0xff]
                  %1280 = vst [vmem:[%s1272 + $0x18] sm:$0xff] %v1279
                  %v1281 = vld [vmem:[%s1271 + $0x20] sm:$0xff]
                  %1282 = vst [vmem:[%s1272 + $0x20] sm:$0xff] %v1281
                  %v1283 = vld [vmem:[%s1271 + $0x28] sm:$0xff]
                  %1284 = vst [vmem:[%s1272 + $0x28] sm:$0xff] %v1283
                  %v1285 = vld [vmem:[%s1271 + $0x30] sm:$0xff]
                  %1286 = vst [vmem:[%s1272 + $0x30] sm:$0xff] %v1285
                  %v1287 = vld [vmem:[%s1271 + $0x38] sm:$0xff]
                  %1288 = vst [vmem:[%s1272 + $0x38] sm:$0xff] %v1287
                  %v1289 = vld [vmem:[%s1271 + $0x40] sm:$0xff]
                  %1290 = vst [vmem:[%s1272 + $0x40] sm:$0xff] %v1289
                  %v1291 = vld [vmem:[%s1271 + $0x48] sm:$0xff]
                  %1292 = vst [vmem:[%s1272 + $0x48] sm:$0xff] %v1291
                  %v1293 = vld [vmem:[%s1271 + $0x50] sm:$0xff]
                  %1294 = vst [vmem:[%s1272 + $0x50] sm:$0xff] %v1293
                  %v1295 = vld [vmem:[%s1271 + $0x58] sm:$0xff]
                  %1296 = vst [vmem:[%s1272 + $0x58] sm:$0xff] %v1295
                  %v1297 = vld [vmem:[%s1271 + $0x60] sm:$0xff]
                  %1298 = vst [vmem:[%s1272 + $0x60] sm:$0xff] %v1297
                  %v1299 = vld [vmem:[%s1271 + $0x68] sm:$0xff]
                  %1300 = vst [vmem:[%s1272 + $0x68] sm:$0xff] %v1299
                  %v1301 = vld [vmem:[%s1271 + $0x70] sm:$0xff]
                  %1302 = vst [vmem:[%s1272 + $0x70] sm:$0xff] %v1301
                  %v1303 = vld [vmem:[%s1271 + $0x78] sm:$0xff]
                  %1304 = vst [vmem:[%s1272 + $0x78] sm:$0xff] %v1303
                  %v1305 = vld [vmem:[%s1271 + $0x80] sm:$0xff]
                  %1306 = vst [vmem:[%s1272 + $0x80] sm:$0xff] %v1305
                  %v1307 = vld [vmem:[%s1271 + $0x88] sm:$0xff]
                  %1308 = vst [vmem:[%s1272 + $0x88] sm:$0xff] %v1307
                  %v1309 = vld [vmem:[%s1271 + $0x90] sm:$0xff]
                  %1310 = vst [vmem:[%s1272 + $0x90] sm:$0xff] %v1309
                  %v1311 = vld [vmem:[%s1271 + $0x98] sm:$0xff]
                  %1312 = vst [vmem:[%s1272 + $0x98] sm:$0xff] %v1311
                  %v1313 = vld [vmem:[%s1271 + $0xa0] sm:$0xff]
                  %1314 = vst [vmem:[%s1272 + $0xa0] sm:$0xff] %v1313
                  %v1315 = vld [vmem:[%s1271 + $0xa8] sm:$0xff]
                  %1316 = vst [vmem:[%s1272 + $0xa8] sm:$0xff] %v1315
                  %v1317 = vld [vmem:[%s1271 + $0xb0] sm:$0xff]
                  %1318 = vst [vmem:[%s1272 + $0xb0] sm:$0xff] %v1317
                  %v1319 = vld [vmem:[%s1271 + $0xb8] sm:$0xff]
                  %1320 = vst [vmem:[%s1272 + $0xb8] sm:$0xff] %v1319
                  %v1321 = vld [vmem:[%s1271 + $0xc0] sm:$0xff]
                  %1322 = vst [vmem:[%s1272 + $0xc0] sm:$0xff] %v1321
                  %v1323 = vld [vmem:[%s1271 + $0xc8] sm:$0xff]
                  %1324 = vst [vmem:[%s1272 + $0xc8] sm:$0xff] %v1323
                  %v1325 = vld [vmem:[%s1271 + $0xd0] sm:$0xff]
                  %1326 = vst [vmem:[%s1272 + $0xd0] sm:$0xff] %v1325
                  %v1327 = vld [vmem:[%s1271 + $0xd8] sm:$0xff]
                  %1328 = vst [vmem:[%s1272 + $0xd8] sm:$0xff] %v1327
                  %v1329 = vld [vmem:[%s1271 + $0xe0] sm:$0xff]
                  %1330 = vst [vmem:[%s1272 + $0xe0] sm:$0xff] %v1329
                  %v1331 = vld [vmem:[%s1271 + $0xe8] sm:$0xff]
                  %1332 = vst [vmem:[%s1272 + $0xe8] sm:$0xff] %v1331
                  %v1333 = vld [vmem:[%s1271 + $0xf0] sm:$0xff]
                  %1334 = vst [vmem:[%s1272 + $0xf0] sm:$0xff] %v1333
                  %v1335 = vld [vmem:[%s1271 + $0xf8] sm:$0xff]
                  %1336 = vst [vmem:[%s1272 + $0xf8] sm:$0xff] %v1335
                  %v1337 = vld [vmem:[%s1271 + $0x100] sm:$0xff]
                  %1338 = vst [vmem:[%s1272 + $0x100] sm:$0xff] %v1337
                  %v1339 = vld [vmem:[%s1271 + $0x108] sm:$0xff]
                  %1340 = vst [vmem:[%s1272 + $0x108] sm:$0xff] %v1339
                  %v1341 = vld [vmem:[%s1271 + $0x110] sm:$0xff]
                  %1342 = vst [vmem:[%s1272 + $0x110] sm:$0xff] %v1341
                  %v1343 = vld [vmem:[%s1271 + $0x118] sm:$0xff]
                  %1344 = vst [vmem:[%s1272 + $0x118] sm:$0xff] %v1343
                  %v1345 = vld [vmem:[%s1271 + $0x120] sm:$0xff]
                  %1346 = vst [vmem:[%s1272 + $0x120] sm:$0xff] %v1345
                  %v1347 = vld [vmem:[%s1271 + $0x128] sm:$0xff]
                  %1348 = vst [vmem:[%s1272 + $0x128] sm:$0xff] %v1347
                  %v1349 = vld [vmem:[%s1271 + $0x130] sm:$0xff]
                  %1350 = vst [vmem:[%s1272 + $0x130] sm:$0xff] %v1349
                  %v1351 = vld [vmem:[%s1271 + $0x138] sm:$0xff]
                  %1352 = vst [vmem:[%s1272 + $0x138] sm:$0xff] %v1351
                  %v1353 = vld [vmem:[%s1271 + $0x140] sm:$0xff]
                  %1354 = vst [vmem:[%s1272 + $0x140] sm:$0xff] %v1353
                  %v1355 = vld [vmem:[%s1271 + $0x148] sm:$0xff]
                  %1356 = vst [vmem:[%s1272 + $0x148] sm:$0xff] %v1355
                  %v1357 = vld [vmem:[%s1271 + $0x150] sm:$0xff]
                  %1358 = vst [vmem:[%s1272 + $0x150] sm:$0xff] %v1357
                  %v1359 = vld [vmem:[%s1271 + $0x158] sm:$0xff]
                  %1360 = vst [vmem:[%s1272 + $0x158] sm:$0xff] %v1359
                  %v1361 = vld [vmem:[%s1271 + $0x160] sm:$0xff]
                  %1362 = vst [vmem:[%s1272 + $0x160] sm:$0xff] %v1361
                  %v1363 = vld [vmem:[%s1271 + $0x168] sm:$0xff]
                  %1364 = vst [vmem:[%s1272 + $0x168] sm:$0xff] %v1363
                  %v1365 = vld [vmem:[%s1271 + $0x170] sm:$0xff]
                  %1366 = vst [vmem:[%s1272 + $0x170] sm:$0xff] %v1365
                  %v1367 = vld [vmem:[%s1271 + $0x178] sm:$0xff]
                  %1368 = vst [vmem:[%s1272 + $0x178] sm:$0xff] %v1367
                  %v1369 = vld [vmem:[%s1271 + $0x180] sm:$0xff]
                  %1370 = vst [vmem:[%s1272 + $0x180] sm:$0xff] %v1369
                  %v1371 = vld [vmem:[%s1271 + $0x188] sm:$0xff]
                  %1372 = vst [vmem:[%s1272 + $0x188] sm:$0xff] %v1371
                  %v1373 = vld [vmem:[%s1271 + $0x190] sm:$0xff]
                  %1374 = vst [vmem:[%s1272 + $0x190] sm:$0xff] %v1373
                  %v1375 = vld [vmem:[%s1271 + $0x198] sm:$0xff]
                  %1376 = vst [vmem:[%s1272 + $0x198] sm:$0xff] %v1375
                  %v1377 = vld [vmem:[%s1271 + $0x1a0] sm:$0xff]
                  %1378 = vst [vmem:[%s1272 + $0x1a0] sm:$0xff] %v1377
                  %v1379 = vld [vmem:[%s1271 + $0x1a8] sm:$0xff]
                  %1380 = vst [vmem:[%s1272 + $0x1a8] sm:$0xff] %v1379
                  %v1381 = vld [vmem:[%s1271 + $0x1b0] sm:$0xff]
                  %1382 = vst [vmem:[%s1272 + $0x1b0] sm:$0xff] %v1381
                  %v1383 = vld [vmem:[%s1271 + $0x1b8] sm:$0xff]
                  %1384 = vst [vmem:[%s1272 + $0x1b8] sm:$0xff] %v1383
                  %v1385 = vld [vmem:[%s1271 + $0x1c0] sm:$0xff]
                  %1386 = vst [vmem:[%s1272 + $0x1c0] sm:$0xff] %v1385
                  %v1387 = vld [vmem:[%s1271 + $0x1c8] sm:$0xff]
                  %1388 = vst [vmem:[%s1272 + $0x1c8] sm:$0xff] %v1387
                  %v1389 = vld [vmem:[%s1271 + $0x1d0] sm:$0xff]
                  %1390 = vst [vmem:[%s1272 + $0x1d0] sm:$0xff] %v1389
                  %v1391 = vld [vmem:[%s1271 + $0x1d8] sm:$0xff]
                  %1392 = vst [vmem:[%s1272 + $0x1d8] sm:$0xff] %v1391
                  %v1393 = vld [vmem:[%s1271 + $0x1e0] sm:$0xff]
                  %1394 = vst [vmem:[%s1272 + $0x1e0] sm:$0xff] %v1393
                  %v1395 = vld [vmem:[%s1271 + $0x1e8] sm:$0xff]
                  %1396 = vst [vmem:[%s1272 + $0x1e8] sm:$0xff] %v1395
                  %v1397 = vld [vmem:[%s1271 + $0x1f0] sm:$0xff]
                  %1398 = vst [vmem:[%s1272 + $0x1f0] sm:$0xff] %v1397
                  %v1399 = vld [vmem:[%s1271 + $0x1f8] sm:$0xff]
                  %1400 = vst [vmem:[%s1272 + $0x1f8] sm:$0xff] %v1399
                  %s1401 = sadd.s32 1, %s1270
                  %p1402 = scmp.ge.s32.totalorder %s1401, %s1263
                  %s1403 = scalar_select %p1402, 0, %s1401
                  %s1404 = smul.u32 %s1403, 512
                  %s1405 = smul.u32 %s1403, 512
                  %s1406 = scalar_lea.vmem %s1070, %s1404 [#allocation2]
                  %s1407 = scalar_lea.vmem %s1081, %s1405
                $region71: #{teacher_end_model_forward.1} parent=65 // loop_footer
                  %s1267 = sadd.s32 %s1265, 1
                $region72: #{teacher_end_model_forward.1} parent=65 // loop_footer_branch
                  %1264 = sbr.rel target = $region68
                $region73: #{teacher_end_model_forward.1} parent=65 // loop_exit
                  _
                %s1408 = sshrl.u32 %s1077, 6
                %s1409 = sand.u32 %s1077, 63
                %s1410 = smul.u32 %s1408, 64
                %s1411 = smul.u32 8, %s1410
                %s1412 = scalar_lea.vmem %s1070, %s1411 [#allocation2]
                %s1413 = smul.u32 8, %s1410
                %s1414 = scalar_lea.vmem %s1081, %s1413
                // While loop
                $region74: #{teacher_end_model_forward.1} parent=65 // loop_pre_header
                  _
                $region75: #{teacher_end_model_forward.1} parent=65 // loop_header
                  %s1416 = sphi 0, %s1418
                  %p1417 = scmp.ge.s32.totalorder %s1416, %s1409
                  %s1421 = sphi 0, %s1428
                  %s1422 = sphi %s1412, %s1431
                  %s1423 = sphi %s1414, %s1432
                $region76: #{teacher_end_model_forward.1} parent=65 // loop_header_branch
                  %1420 = sbr.rel (%p1417) target = $region80
                $region77: #{teacher_end_model_forward.1} parent=65 // loop_body
                  %v1424 = vld [vmem:[%s1422] sm:$0xff]
                  %1425 = vst [vmem:[%s1423] sm:$0xff] %v1424
                  %s1426 = sadd.s32 1, %s1421
                  %p1427 = scmp.ge.s32.totalorder %s1426, %s1409
                  %s1428 = scalar_select %p1427, 0, %s1426
                  %s1429 = smul.u32 %s1428, 8
                  %s1430 = smul.u32 %s1428, 8
                  %s1431 = scalar_lea.vmem %s1412, %s1429 [#allocation2]
                  %s1432 = scalar_lea.vmem %s1414, %s1430
                $region78: #{teacher_end_model_forward.1} parent=65 // loop_footer
                  %s1418 = sadd.s32 %s1416, 1
                $region79: #{teacher_end_model_forward.1} parent=65 // loop_footer_branch
                  %1415 = sbr.rel target = $region75
                $region80: #{teacher_end_model_forward.1} parent=65 // loop_exit
                  _
              $region66: #{teacher_end_model_forward.1} parent=43 // pred_fallthru
                _
              // Predicated region
              $region81: #{teacher_end_model_forward.1} parent=43 // pred_check
                _
              $region82: #{teacher_end_model_forward.1} parent=43 // pred_check_branch
                %1434 = sbr.rel target = $region84
              $region83: #{teacher_end_model_forward.1} parent=43 // pred_region
                _
              $region84: #{teacher_end_model_forward.1} parent=43 // pred_fallthru
                _
            $region44: #{teacher_end_model_forward.1} parent=39 // pred_fallthru
              _
            // Predicated region
            $region45: #{teacher_end_model_forward.1} parent=39 // pred_check
              _
            $region46: #{teacher_end_model_forward.1} parent=39 // pred_check_branch
              %1088 = sbr.rel target = $region48
            $region47: #{teacher_end_model_forward.1} parent=39 // pred_region
              %s1090 = ssub.s32 256, 1
              %s1091 = sshrl.u32 %s1077, 6
              // While loop
              $region49: #{teacher_end_model_forward.1} parent=47 // loop_pre_header
                _
              $region50: #{teacher_end_model_forward.1} parent=47 // loop_header
                %s1093 = sphi 0, %s1095
                %p1094 = scmp.ge.s32.totalorder %s1093, %s1091
                %s1098 = sphi 0, %s1231
                %s1099 = sphi %s1070, %s1234
                %s1100 = sphi %s1081, %s1235
              $region51: #{teacher_end_model_forward.1} parent=47 // loop_header_branch
                %1097 = sbr.rel (%p1094) target = $region55
              $region52: #{teacher_end_model_forward.1} parent=47 // loop_body
                %v1101 = vld [vmem:[%s1099] sm:%s1090]
                %1102 = vst [vmem:[%s1100] sm:%s1090] %v1101
                %v1103 = vld [vmem:[%s1099 + $0x8] sm:%s1090]
                %1104 = vst [vmem:[%s1100 + $0x8] sm:%s1090] %v1103
                %v1105 = vld [vmem:[%s1099 + $0x10] sm:%s1090]
                %1106 = vst [vmem:[%s1100 + $0x10] sm:%s1090] %v1105
                %v1107 = vld [vmem:[%s1099 + $0x18] sm:%s1090]
                %1108 = vst [vmem:[%s1100 + $0x18] sm:%s1090] %v1107
                %v1109 = vld [vmem:[%s1099 + $0x20] sm:%s1090]
                %1110 = vst [vmem:[%s1100 + $0x20] sm:%s1090] %v1109
                %v1111 = vld [vmem:[%s1099 + $0x28] sm:%s1090]
                %1112 = vst [vmem:[%s1100 + $0x28] sm:%s1090] %v1111
                %v1113 = vld [vmem:[%s1099 + $0x30] sm:%s1090]
                %1114 = vst [vmem:[%s1100 + $0x30] sm:%s1090] %v1113
                %v1115 = vld [vmem:[%s1099 + $0x38] sm:%s1090]
                %1116 = vst [vmem:[%s1100 + $0x38] sm:%s1090] %v1115
                %v1117 = vld [vmem:[%s1099 + $0x40] sm:%s1090]
                %1118 = vst [vmem:[%s1100 + $0x40] sm:%s1090] %v1117
                %v1119 = vld [vmem:[%s1099 + $0x48] sm:%s1090]
                %1120 = vst [vmem:[%s1100 + $0x48] sm:%s1090] %v1119
                %v1121 = vld [vmem:[%s1099 + $0x50] sm:%s1090]
                %1122 = vst [vmem:[%s1100 + $0x50] sm:%s1090] %v1121
                %v1123 = vld [vmem:[%s1099 + $0x58] sm:%s1090]
                %1124 = vst [vmem:[%s1100 + $0x58] sm:%s1090] %v1123
                %v1125 = vld [vmem:[%s1099 + $0x60] sm:%s1090]
                %1126 = vst [vmem:[%s1100 + $0x60] sm:%s1090] %v1125
                %v1127 = vld [vmem:[%s1099 + $0x68] sm:%s1090]
                %1128 = vst [vmem:[%s1100 + $0x68] sm:%s1090] %v1127
                %v1129 = vld [vmem:[%s1099 + $0x70] sm:%s1090]
                %1130 = vst [vmem:[%s1100 + $0x70] sm:%s1090] %v1129
                %v1131 = vld [vmem:[%s1099 + $0x78] sm:%s1090]
                %1132 = vst [vmem:[%s1100 + $0x78] sm:%s1090] %v1131
                %v1133 = vld [vmem:[%s1099 + $0x80] sm:%s1090]
                %1134 = vst [vmem:[%s1100 + $0x80] sm:%s1090] %v1133
                %v1135 = vld [vmem:[%s1099 + $0x88] sm:%s1090]
                %1136 = vst [vmem:[%s1100 + $0x88] sm:%s1090] %v1135
                %v1137 = vld [vmem:[%s1099 + $0x90] sm:%s1090]
                %1138 = vst [vmem:[%s1100 + $0x90] sm:%s1090] %v1137
                %v1139 = vld [vmem:[%s1099 + $0x98] sm:%s1090]
                %1140 = vst [vmem:[%s1100 + $0x98] sm:%s1090] %v1139
                %v1141 = vld [vmem:[%s1099 + $0xa0] sm:%s1090]
                %1142 = vst [vmem:[%s1100 + $0xa0] sm:%s1090] %v1141
                %v1143 = vld [vmem:[%s1099 + $0xa8] sm:%s1090]
                %1144 = vst [vmem:[%s1100 + $0xa8] sm:%s1090] %v1143
                %v1145 = vld [vmem:[%s1099 + $0xb0] sm:%s1090]
                %1146 = vst [vmem:[%s1100 + $0xb0] sm:%s1090] %v1145
                %v1147 = vld [vmem:[%s1099 + $0xb8] sm:%s1090]
                %1148 = vst [vmem:[%s1100 + $0xb8] sm:%s1090] %v1147
                %v1149 = vld [vmem:[%s1099 + $0xc0] sm:%s1090]
                %1150 = vst [vmem:[%s1100 + $0xc0] sm:%s1090] %v1149
                %v1151 = vld [vmem:[%s1099 + $0xc8] sm:%s1090]
                %1152 = vst [vmem:[%s1100 + $0xc8] sm:%s1090] %v1151
                %v1153 = vld [vmem:[%s1099 + $0xd0] sm:%s1090]
                %1154 = vst [vmem:[%s1100 + $0xd0] sm:%s1090] %v1153
                %v1155 = vld [vmem:[%s1099 + $0xd8] sm:%s1090]
                %1156 = vst [vmem:[%s1100 + $0xd8] sm:%s1090] %v1155
                %v1157 = vld [vmem:[%s1099 + $0xe0] sm:%s1090]
                %1158 = vst [vmem:[%s1100 + $0xe0] sm:%s1090] %v1157
                %v1159 = vld [vmem:[%s1099 + $0xe8] sm:%s1090]
                %1160 = vst [vmem:[%s1100 + $0xe8] sm:%s1090] %v1159
                %v1161 = vld [vmem:[%s1099 + $0xf0] sm:%s1090]
                %1162 = vst [vmem:[%s1100 + $0xf0] sm:%s1090] %v1161
                %v1163 = vld [vmem:[%s1099 + $0xf8] sm:%s1090]
                %1164 = vst [vmem:[%s1100 + $0xf8] sm:%s1090] %v1163
                %v1165 = vld [vmem:[%s1099 + $0x100] sm:%s1090]
                %1166 = vst [vmem:[%s1100 + $0x100] sm:%s1090] %v1165
                %v1167 = vld [vmem:[%s1099 + $0x108] sm:%s1090]
                %1168 = vst [vmem:[%s1100 + $0x108] sm:%s1090] %v1167
                %v1169 = vld [vmem:[%s1099 + $0x110] sm:%s1090]
                %1170 = vst [vmem:[%s1100 + $0x110] sm:%s1090] %v1169
                %v1171 = vld [vmem:[%s1099 + $0x118] sm:%s1090]
                %1172 = vst [vmem:[%s1100 + $0x118] sm:%s1090] %v1171
                %v1173 = vld [vmem:[%s1099 + $0x120] sm:%s1090]
                %1174 = vst [vmem:[%s1100 + $0x120] sm:%s1090] %v1173
                %v1175 = vld [vmem:[%s1099 + $0x128] sm:%s1090]
                %1176 = vst [vmem:[%s1100 + $0x128] sm:%s1090] %v1175
                %v1177 = vld [vmem:[%s1099 + $0x130] sm:%s1090]
                %1178 = vst [vmem:[%s1100 + $0x130] sm:%s1090] %v1177
                %v1179 = vld [vmem:[%s1099 + $0x138] sm:%s1090]
                %1180 = vst [vmem:[%s1100 + $0x138] sm:%s1090] %v1179
                %v1181 = vld [vmem:[%s1099 + $0x140] sm:%s1090]
                %1182 = vst [vmem:[%s1100 + $0x140] sm:%s1090] %v1181
                %v1183 = vld [vmem:[%s1099 + $0x148] sm:%s1090]
                %1184 = vst [vmem:[%s1100 + $0x148] sm:%s1090] %v1183
                %v1185 = vld [vmem:[%s1099 + $0x150] sm:%s1090]
                %1186 = vst [vmem:[%s1100 + $0x150] sm:%s1090] %v1185
                %v1187 = vld [vmem:[%s1099 + $0x158] sm:%s1090]
                %1188 = vst [vmem:[%s1100 + $0x158] sm:%s1090] %v1187
                %v1189 = vld [vmem:[%s1099 + $0x160] sm:%s1090]
                %1190 = vst [vmem:[%s1100 + $0x160] sm:%s1090] %v1189
                %v1191 = vld [vmem:[%s1099 + $0x168] sm:%s1090]
                %1192 = vst [vmem:[%s1100 + $0x168] sm:%s1090] %v1191
                %v1193 = vld [vmem:[%s1099 + $0x170] sm:%s1090]
                %1194 = vst [vmem:[%s1100 + $0x170] sm:%s1090] %v1193
                %v1195 = vld [vmem:[%s1099 + $0x178] sm:%s1090]
                %1196 = vst [vmem:[%s1100 + $0x178] sm:%s1090] %v1195
                %v1197 = vld [vmem:[%s1099 + $0x180] sm:%s1090]
                %1198 = vst [vmem:[%s1100 + $0x180] sm:%s1090] %v1197
                %v1199 = vld [vmem:[%s1099 + $0x188] sm:%s1090]
                %1200 = vst [vmem:[%s1100 + $0x188] sm:%s1090] %v1199
                %v1201 = vld [vmem:[%s1099 + $0x190] sm:%s1090]
                %1202 = vst [vmem:[%s1100 + $0x190] sm:%s1090] %v1201
                %v1203 = vld [vmem:[%s1099 + $0x198] sm:%s1090]
                %1204 = vst [vmem:[%s1100 + $0x198] sm:%s1090] %v1203
                %v1205 = vld [vmem:[%s1099 + $0x1a0] sm:%s1090]
                %1206 = vst [vmem:[%s1100 + $0x1a0] sm:%s1090] %v1205
                %v1207 = vld [vmem:[%s1099 + $0x1a8] sm:%s1090]
                %1208 = vst [vmem:[%s1100 + $0x1a8] sm:%s1090] %v1207
                %v1209 = vld [vmem:[%s1099 + $0x1b0] sm:%s1090]
                %1210 = vst [vmem:[%s1100 + $0x1b0] sm:%s1090] %v1209
                %v1211 = vld [vmem:[%s1099 + $0x1b8] sm:%s1090]
                %1212 = vst [vmem:[%s1100 + $0x1b8] sm:%s1090] %v1211
                %v1213 = vld [vmem:[%s1099 + $0x1c0] sm:%s1090]
                %1214 = vst [vmem:[%s1100 + $0x1c0] sm:%s1090] %v1213
                %v1215 = vld [vmem:[%s1099 + $0x1c8] sm:%s1090]
                %1216 = vst [vmem:[%s1100 + $0x1c8] sm:%s1090] %v1215
                %v1217 = vld [vmem:[%s1099 + $0x1d0] sm:%s1090]
                %1218 = vst [vmem:[%s1100 + $0x1d0] sm:%s1090] %v1217
                %v1219 = vld [vmem:[%s1099 + $0x1d8] sm:%s1090]
                %1220 = vst [vmem:[%s1100 + $0x1d8] sm:%s1090] %v1219
                %v1221 = vld [vmem:[%s1099 + $0x1e0] sm:%s1090]
                %1222 = vst [vmem:[%s1100 + $0x1e0] sm:%s1090] %v1221
                %v1223 = vld [vmem:[%s1099 + $0x1e8] sm:%s1090]
                %1224 = vst [vmem:[%s1100 + $0x1e8] sm:%s1090] %v1223
                %v1225 = vld [vmem:[%s1099 + $0x1f0] sm:%s1090]
                %1226 = vst [vmem:[%s1100 + $0x1f0] sm:%s1090] %v1225
                %v1227 = vld [vmem:[%s1099 + $0x1f8] sm:%s1090]
                %1228 = vst [vmem:[%s1100 + $0x1f8] sm:%s1090] %v1227
                %s1229 = sadd.s32 1, %s1098
                %p1230 = scmp.ge.s32.totalorder %s1229, %s1091
                %s1231 = scalar_select %p1230, 0, %s1229
                %s1232 = smul.u32 %s1231, 512
                %s1233 = smul.u32 %s1231, 512
                %s1234 = scalar_lea.vmem %s1070, %s1232 [#allocation2]
                %s1235 = scalar_lea.vmem %s1081, %s1233
              $region53: #{teacher_end_model_forward.1} parent=47 // loop_footer
                %s1095 = sadd.s32 %s1093, 1
              $region54: #{teacher_end_model_forward.1} parent=47 // loop_footer_branch
                %1092 = sbr.rel target = $region50
              $region55: #{teacher_end_model_forward.1} parent=47 // loop_exit
                _
              %s1236 = sshrl.u32 %s1077, 6
              %s1237 = sand.u32 %s1077, 63
              %s1238 = smul.u32 %s1236, 64
              %s1239 = smul.u32 8, %s1238
              %s1240 = scalar_lea.vmem %s1070, %s1239 [#allocation2]
              %s1241 = smul.u32 8, %s1238
              %s1242 = scalar_lea.vmem %s1081, %s1241
              // While loop
              $region56: #{teacher_end_model_forward.1} parent=47 // loop_pre_header
                _
              $region57: #{teacher_end_model_forward.1} parent=47 // loop_header
                %s1244 = sphi 0, %s1246
                %p1245 = scmp.ge.s32.totalorder %s1244, %s1237
                %s1249 = sphi 0, %s1256
                %s1250 = sphi %s1240, %s1259
                %s1251 = sphi %s1242, %s1260
              $region58: #{teacher_end_model_forward.1} parent=47 // loop_header_branch
                %1248 = sbr.rel (%p1245) target = $region62
              $region59: #{teacher_end_model_forward.1} parent=47 // loop_body
                %v1252 = vld [vmem:[%s1250] sm:%s1090]
                %1253 = vst [vmem:[%s1251] sm:%s1090] %v1252
                %s1254 = sadd.s32 1, %s1249
                %p1255 = scmp.ge.s32.totalorder %s1254, %s1237
                %s1256 = scalar_select %p1255, 0, %s1254
                %s1257 = smul.u32 %s1256, 8
                %s1258 = smul.u32 %s1256, 8
                %s1259 = scalar_lea.vmem %s1240, %s1257 [#allocation2]
                %s1260 = scalar_lea.vmem %s1242, %s1258
              $region60: #{teacher_end_model_forward.1} parent=47 // loop_footer
                %s1246 = sadd.s32 %s1244, 1
              $region61: #{teacher_end_model_forward.1} parent=47 // loop_footer_branch
                %1243 = sbr.rel target = $region57
              $region62: #{teacher_end_model_forward.1} parent=47 // loop_exit
                _
            $region48: #{teacher_end_model_forward.1} parent=39 // pred_fallthru
              _
          $region40: #{teacher_end_model_forward.1} parent=35 // pred_fallthru
            _
          %1435 = vnop
        $region36: #{teacher_end_model_forward.1} parent=31 // pred_fallthru
          _
      $region32: #{teacher_end_model_forward.1} parent=5 // pred_fallthru
        _
      %p1436 = scmp.le.s32.totalorder 2, %s9
      // Predicated region
      $region85: #{teacher_end_model_forward.1} parent=5 // pred_check
        %p1437 = pneg %p1436
      $region86: #{teacher_end_model_forward.1} parent=5 // pred_check_branch
        %1439 = sbr.rel (%p1437) target = $region88
      $region87: #{teacher_end_model_forward.1} parent=5 // pred_region
        %s1440 = ssub.s32 %s9, 2
        // Predicated region
        $region89: #{teacher_end_model_forward.1} parent=87 // pred_check
          %p1441 = pneg %p106
        $region90: #{teacher_end_model_forward.1} parent=87 // pred_check_branch
          %1443 = sbr.rel (%p1441) target = $region92
        $region91: #{teacher_end_model_forward.1} parent=87 // pred_region
          %s1444 = sand.u32 %s91, 1
          %s1445 = sand.u32 %s91, 1
          %s1446 = smul.addr %s1445, 512
          %s1447 = scalar_lea.vmem [#allocation2], %s1446
        $region92: #{teacher_end_model_forward.1} parent=87 // pred_fallthru
          _
      $region88: #{teacher_end_model_forward.1} parent=5 // pred_fallthru
        _
    $region6: #{teacher_end_model_forward.1} parent=1 // loop_footer
      %s13 = sadd.s32 1, %s9
    $region7: #{teacher_end_model_forward.1} parent=1 // loop_footer_branch
      %8 = sbr.rel target = $region3
    $region8: #{teacher_end_model_forward.1} parent=1 // loop_exit
      _

</llo_original>
